<compile_context>
chip_gen: v7x
topology: tpu7x:2x2x1
jax: 0.10.0
libtpu: 0.0.40
codegen_flags: <defaults>
</compile_context>

<pallas_src>
import functools

import jax
import jax.numpy as jnp
from jax import lax
from jax.experimental import pallas as pl
from jax.experimental.pallas import tpu as pltpu


def _flow_head_kernel(x_ref, w1_ref, b1_ref, w2_ref, b2_ref, mask_ref, o_ref,
                      xpad_ref, hpad_ref, *, H, W, CIN, MID, COUT, BT):
    # x_ref   : (BT, CIN, H*W)        input images, channels-major
    # w1_ref  : (MID, 9*CIN)          conv1 weights, 3x3 taps fused into K
    # b1_ref  : (MID, 1)
    # w2_ref  : (COUT, 9*MID)         conv2 weights, 3x3 taps fused into K
    # b2_ref  : (COUT, 1)
    # mask_ref: (2, H*W)              [0]: 1.0 where x>0, [1]: 1.0 where x<W-1
    # o_ref   : (BT, COUT, H*W)       lane-dense output
    # xpad_ref: (CIN, H*W + 2*(W+1))  VMEM staging, flat zero-padded pixels
    # hpad_ref: (MID, H*W + 2*(W+1))  VMEM staging for relu(conv1)
    HW = H * W
    PAD = W + 1
    f32 = jnp.float32

    # Zero only the two halo strips of each staging buffer; the interior is
    # fully overwritten per image and the strips are never written again.
    xpad_ref[:, 0:PAD] = jnp.zeros((CIN, PAD), f32)
    xpad_ref[:, PAD + HW:PAD + HW + PAD] = jnp.zeros((CIN, PAD), f32)
    hpad_ref[:, 0:PAD] = jnp.zeros((MID, PAD), f32)
    hpad_ref[:, PAD + HW:PAD + HW + PAD] = jnp.zeros((MID, PAD), f32)

    mask_l = mask_ref[0:1, :]   # kills dx==0 taps that wrap to previous row
    mask_r = mask_ref[1:2, :]   # kills dx==2 taps that wrap to next row

    def fused_taps(pad_ref):
        # Build the (9*C, H*W) im2col-style RHS: 9 statically shifted lane
        # windows of the zero-padded flat image, stacked along sublanes so a
        # single matmul contracts over all 9 taps at once.
        taps = []
        for dy in range(3):
            for dx in range(3):
                off = (dy - 1) * W + (dx - 1)
                t = pad_ref[:, PAD + off:PAD + off + HW]
                if dx == 0:
                    t = t * mask_l
                elif dx == 2:
                    t = t * mask_r
                taps.append(t)
        return jnp.concatenate(taps, axis=0)

    w1 = w1_ref[...]
    b1 = b1_ref[...]
    w2 = w2_ref[...]
    b2 = b2_ref[...]

    for b in range(BT):  # BT is a small static constant -> fully unrolled
        # ---- conv1 (3x3, pad=1) + ReLU ----
        xpad_ref[:, PAD:PAD + HW] = x_ref[b].astype(f32)
        h = jnp.dot(w1, fused_taps(xpad_ref), preferred_element_type=f32) + b1
        h = jnp.maximum(h, 0.0)                                 # (MID, H*W)
        # ---- conv2 (3x3, pad=1) ----
        hpad_ref[:, PAD:PAD + HW] = h
        out = jnp.dot(w2, fused_taps(hpad_ref), preferred_element_type=f32) + b2
        o_ref[b] = out.astype(o_ref.dtype)                      # (COUT, H*W)


def _pick_batch_block(B):
    """Largest batch block <= 4 that divides B while keeping >= 2 grid steps
    (so both v7x TensorCores get work when B >= 2)."""
    if B <= 1:
        return 1
    for bt in (4, 3, 2, 1):
        if bt <= B // 2 and B % bt == 0:
            return bt
    return 1


def flow_head_pallas(x_nchw, w1, b1, w2, b2, *, batch_block=None):
    """x_nchw: (B, CIN, H, W); w1: (MID, CIN, 3, 3); b1: (MID,);
       w2: (COUT, MID, 3, 3); b2: (COUT,).  Returns (B, COUT, H, W)."""
    B, CIN, H, W = x_nchw.shape
    MID = w1.shape[0]
    COUT = w2.shape[0]
    HW = H * W

    BT = _pick_batch_block(B) if batch_block is None else batch_block
    assert B % BT == 0, (B, BT)

    # Free reshapes / tiny weight reshuffles only -- no HBM pad/transpose pass.
    x_flat = x_nchw.reshape(B, CIN, HW)
    w1_f = jnp.transpose(w1, (0, 2, 3, 1)).reshape(MID, 9 * CIN)   # (O,kh,kw,I)
    w2_f = jnp.transpose(w2, (0, 2, 3, 1)).reshape(COUT, 9 * MID)
    b1_c = b1.reshape(MID, 1)
    b2_c = b2.reshape(COUT, 1)

    col = jnp.arange(HW, dtype=jnp.int32) % W
    masks = jnp.stack([col != 0, col != (W - 1)]).astype(jnp.float32)  # (2, HW)

    kernel = functools.partial(_flow_head_kernel, H=H, W=W, CIN=CIN, MID=MID,
                               COUT=COUT, BT=BT)

    out_flat = pl.pallas_call(
        kernel,
        out_shape=jax.ShapeDtypeStruct((B, COUT, HW), x_nchw.dtype),
        grid_spec=pltpu.PrefetchScalarGridSpec(
            num_scalar_prefetch=0,
            grid=(B // BT,),
            in_specs=[
                pl.BlockSpec((BT, CIN, HW), lambda i: (i, 0, 0)),
                pl.BlockSpec((MID, 9 * CIN), lambda i: (0, 0)),
                pl.BlockSpec((MID, 1), lambda i: (0, 0)),
                pl.BlockSpec((COUT, 9 * MID), lambda i: (0, 0)),
                pl.BlockSpec((COUT, 1), lambda i: (0, 0)),
                pl.BlockSpec((2, HW), lambda i: (0, 0)),
            ],
            out_specs=pl.BlockSpec((BT, COUT, HW), lambda i: (i, 0, 0)),
            scratch_shapes=[
                pltpu.VMEM((CIN, HW + 2 * (W + 1)), jnp.float32),
                pltpu.VMEM((MID, HW + 2 * (W + 1)), jnp.float32),
            ],
        ),
        compiler_params=pltpu.CompilerParams(
            dimension_semantics=("parallel",)),
    )(x_flat, w1_f, b1_c, w2_f, b2_c, masks)

    return out_flat.reshape(B, COUT, H, W)


def _reference(x_nchw, w1, b1, w2, b2):
    """Pure-JAX reference matching torch F.conv2d (NCHW / OIHW, pad=1)."""
    dn = ("NCHW", "OIHW", "NCHW")
    y = lax.conv_general_dilated(x_nchw, w1, (1, 1), [(1, 1), (1, 1)],
                                 dimension_numbers=dn,
                                 precision=lax.Precision.HIGHEST)
    y = jnp.maximum(y + b1.reshape(1, -1, 1, 1), 0.0)
    y = lax.conv_general_dilated(y, w2, (1, 1), [(1, 1), (1, 1)],
                                 dimension_numbers=dn,
                                 precision=lax.Precision.HIGHEST)
    return y + b2.reshape(1, -1, 1, 1)


if __name__ == "__main__":
    # Module defaults: input_dim=64, mid_dim=32, flow output channels=2.
    B, CIN, MID, COUT, H, W = 2, 64, 32, 2, 16, 16

    key = jax.random.PRNGKey(0)
    k_x, k_w1, k_b1, k_w2, k_b2 = jax.random.split(key, 5)

    x = jax.random.normal(k_x, (B, CIN, H, W), dtype=jnp.float32)
    # Deterministic synthetic parameters (shapes from nn.Conv2d in __init__).
    w1 = 0.05 * jax.random.normal(k_w1, (MID, CIN, 3, 3), dtype=jnp.float32)
    b1 = 0.05 * jax.random.normal(k_b1, (MID,), dtype=jnp.float32)
    w2 = 0.05 * jax.random.normal(k_w2, (COUT, MID, 3, 3), dtype=jnp.float32)
    b2 = 0.05 * jax.random.normal(k_b2, (COUT,), dtype=jnp.float32)

    out = flow_head_pallas(x, w1, b1, w2, b2)
    out = jax.block_until_ready(out)

    ref = _reference(x, w1, b1, w2, b2)
    assert out.shape == (B, COUT, H, W), out.shape
    assert jnp.allclose(out, ref, rtol=1e-4, atol=1e-4), (
        float(jnp.max(jnp.abs(out - ref))))

    print("KERNEL_OK")
</pallas_src>

<mosaic_0001>
module attributes {stable_mosaic.version = 11 : i64} {
  func.func @_flow_head_kernel(%arg0: i32, %arg1: memref<1x64x256xf32, #tpu.memory_space<vmem>>, %arg2: memref<32x576xf32, #tpu.memory_space<vmem>>, %arg3: memref<32x1xf32, #tpu.memory_space<vmem>>, %arg4: memref<2x288xf32, #tpu.memory_space<vmem>>, %arg5: memref<2x1xf32, #tpu.memory_space<vmem>>, %arg6: memref<2x256xf32, #tpu.memory_space<vmem>>, %arg7: memref<1x2x256xf32, #tpu.memory_space<vmem>>, %arg8: memref<64x290xf32, #tpu.memory_space<vmem>>, %arg9: memref<32x290xf32, #tpu.memory_space<vmem>>) attributes {dimension_semantics = [#tpu.dimension_semantics<parallel>], iteration_bounds = array<i64: 2>, scalar_prefetch = 0 : i64, scratch_operands = 2 : i64, tpu.core_type = #tpu.core_type<tc>, window_params = [{transform_indices = @transform_0, window_bounds = array<i64: 1, 64, 256>}, {pipeline_mode = #tpu.pipeline_mode<synchronous>, transform_indices = @transform_1, window_bounds = array<i64: 32, 576>}, {pipeline_mode = #tpu.pipeline_mode<synchronous>, transform_indices = @transform_2, window_bounds = array<i64: 32, 1>}, {pipeline_mode = #tpu.pipeline_mode<synchronous>, transform_indices = @transform_3, window_bounds = array<i64: 2, 288>}, {pipeline_mode = #tpu.pipeline_mode<synchronous>, transform_indices = @transform_4, window_bounds = array<i64: 2, 1>}, {pipeline_mode = #tpu.pipeline_mode<synchronous>, transform_indices = @transform_5, window_bounds = array<i64: 2, 256>}, {transform_indices = @transform_6, window_bounds = array<i64: 1, 2, 256>}]} {
    %cst = arith.constant 0.000000e+00 : f32
    %0 = vector.broadcast %cst : f32 to vector<64x17xf32>
    %c0 = arith.constant 0 : index
    %c0_0 = arith.constant 0 : index
    %1 = vector.load %arg8[%c0, %c0_0] : memref<64x290xf32, #tpu.memory_space<vmem>>, vector<64x17xf32>
    tpu.vector_store %arg8[%c0, %c0_0], %0 {strides = array<i32>} : memref<64x290xf32, #tpu.memory_space<vmem>>, vector<64x17xf32>,
    %cst_1 = arith.constant 0.000000e+00 : f32
    %2 = vector.broadcast %cst_1 : f32 to vector<64x17xf32>
    %c0_2 = arith.constant 0 : index
    %c273 = arith.constant 273 : index
    %3 = vector.load %arg8[%c0_2, %c273] : memref<64x290xf32, #tpu.memory_space<vmem>>, vector<64x17xf32>
    tpu.vector_store %arg8[%c0_2, %c273], %2 {strides = array<i32>} : memref<64x290xf32, #tpu.memory_space<vmem>>, vector<64x17xf32>,
    %cst_3 = arith.constant 0.000000e+00 : f32
    %4 = vector.broadcast %cst_3 : f32 to vector<32x17xf32>
    %c0_4 = arith.constant 0 : index
    %c0_5 = arith.constant 0 : index
    %5 = vector.load %arg9[%c0_4, %c0_5] : memref<32x290xf32, #tpu.memory_space<vmem>>, vector<32x17xf32>
    tpu.vector_store %arg9[%c0_4, %c0_5], %4 {strides = array<i32>} : memref<32x290xf32, #tpu.memory_space<vmem>>, vector<32x17xf32>,
    %cst_6 = arith.constant 0.000000e+00 : f32
    %6 = vector.broadcast %cst_6 : f32 to vector<32x17xf32>
    %c0_7 = arith.constant 0 : index
    %c273_8 = arith.constant 273 : index
    %7 = vector.load %arg9[%c0_7, %c273_8] : memref<32x290xf32, #tpu.memory_space<vmem>>, vector<32x17xf32>
    tpu.vector_store %arg9[%c0_7, %c273_8], %6 {strides = array<i32>} : memref<32x290xf32, #tpu.memory_space<vmem>>, vector<32x17xf32>,
    %c0_9 = arith.constant 0 : index
    %c0_10 = arith.constant 0 : index
    %8 = vector.load %arg6[%c0_9, %c0_10] : memref<2x256xf32, #tpu.memory_space<vmem>>, vector<1x256xf32>
    %c1 = arith.constant 1 : index
    %c0_11 = arith.constant 0 : index
    %9 = vector.load %arg6[%c1, %c0_11] : memref<2x256xf32, #tpu.memory_space<vmem>>, vector<1x256xf32>
    %c0_12 = arith.constant 0 : index
    %c0_13 = arith.constant 0 : index
    %10 = vector.load %arg2[%c0_12, %c0_13] : memref<32x576xf32, #tpu.memory_space<vmem>>, vector<32x576xf32>
    %c0_14 = arith.constant 0 : index
    %c0_15 = arith.constant 0 : index
    %11 = vector.load %arg3[%c0_14, %c0_15] : memref<32x1xf32, #tpu.memory_space<vmem>>, vector<32x1xf32>
    %c0_16 = arith.constant 0 : index
    %c0_17 = arith.constant 0 : index
    %12 = vector.load %arg4[%c0_16, %c0_17] : memref<2x288xf32, #tpu.memory_space<vmem>>, vector<2x288xf32>
    %c0_18 = arith.constant 0 : index
    %c0_19 = arith.constant 0 : index
    %13 = vector.load %arg5[%c0_18, %c0_19] : memref<2x1xf32, #tpu.memory_space<vmem>>, vector<2x1xf32>
    %c0_20 = arith.constant 0 : index
    %c0_21 = arith.constant 0 : index
    %c0_22 = arith.constant 0 : index
    %14 = vector.load %arg1[%c0_20, %c0_21, %c0_22] : memref<1x64x256xf32, #tpu.memory_space<vmem>>, vector<1x64x256xf32>
    %15 = vector.shape_cast %14 : vector<1x64x256xf32> to vector<64x256xf32>
    %c0_23 = arith.constant 0 : index
    %c17 = arith.constant 17 : index
    %16 = vector.load %arg8[%c0_23, %c17] : memref<64x290xf32, #tpu.memory_space<vmem>>, vector<64x256xf32>
    tpu.vector_store %arg8[%c0_23, %c17], %15 {strides = array<i32>} : memref<64x290xf32, #tpu.memory_space<vmem>>, vector<64x256xf32>,
    %c0_24 = arith.constant 0 : index
    %c0_25 = arith.constant 0 : index
    %17 = vector.load %arg8[%c0_24, %c0_25] : memref<64x290xf32, #tpu.memory_space<vmem>>, vector<64x256xf32>
    %18 = vector.broadcast %8 : vector<1x256xf32> to vector<64x256xf32>
    %19 = arith.mulf %17, %18 : vector<64x256xf32>
    %c0_26 = arith.constant 0 : index
    %c1_27 = arith.constant 1 : index
    %20 = vector.load %arg8[%c0_26, %c1_27] : memref<64x290xf32, #tpu.memory_space<vmem>>, vector<64x256xf32>
    %c0_28 = arith.constant 0 : index
    %c2 = arith.constant 2 : index
    %21 = vector.load %arg8[%c0_28, %c2] : memref<64x290xf32, #tpu.memory_space<vmem>>, vector<64x256xf32>
    %22 = vector.broadcast %9 : vector<1x256xf32> to vector<64x256xf32>
    %23 = arith.mulf %21, %22 : vector<64x256xf32>
    %c0_29 = arith.constant 0 : index
    %c16 = arith.constant 16 : index
    %24 = vector.load %arg8[%c0_29, %c16] : memref<64x290xf32, #tpu.memory_space<vmem>>, vector<64x256xf32>
    %25 = vector.broadcast %8 : vector<1x256xf32> to vector<64x256xf32>
    %26 = arith.mulf %24, %25 : vector<64x256xf32>
    %c0_30 = arith.constant 0 : index
    %c17_31 = arith.constant 17 : index
    %27 = vector.load %arg8[%c0_30, %c17_31] : memref<64x290xf32, #tpu.memory_space<vmem>>, vector<64x256xf32>
    %c0_32 = arith.constant 0 : index
    %c18 = arith.constant 18 : index
    %28 = vector.load %arg8[%c0_32, %c18] : memref<64x290xf32, #tpu.memory_space<vmem>>, vector<64x256xf32>
    %29 = vector.broadcast %9 : vector<1x256xf32> to vector<64x256xf32>
    %30 = arith.mulf %28, %29 : vector<64x256xf32>
    %c0_33 = arith.constant 0 : index
    %c32 = arith.constant 32 : index
    %31 = vector.load %arg8[%c0_33, %c32] : memref<64x290xf32, #tpu.memory_space<vmem>>, vector<64x256xf32>
    %32 = vector.broadcast %8 : vector<1x256xf32> to vector<64x256xf32>
    %33 = arith.mulf %31, %32 : vector<64x256xf32>
    %c0_34 = arith.constant 0 : index
    %c33 = arith.constant 33 : index
    %34 = vector.load %arg8[%c0_34, %c33] : memref<64x290xf32, #tpu.memory_space<vmem>>, vector<64x256xf32>
    %c0_35 = arith.constant 0 : index
    %c34 = arith.constant 34 : index
    %35 = vector.load %arg8[%c0_35, %c34] : memref<64x290xf32, #tpu.memory_space<vmem>>, vector<64x256xf32>
    %36 = vector.broadcast %9 : vector<1x256xf32> to vector<64x256xf32>
    %37 = arith.mulf %35, %36 : vector<64x256xf32>
    %38 = tpu.concatenate %19, %20, %23, %26, %27, %30, %33, %34, %37 in 0 : vector<64x256xf32>, vector<64x256xf32>, vector<64x256xf32>, vector<64x256xf32>, vector<64x256xf32>, vector<64x256xf32>, vector<64x256xf32>, vector<64x256xf32>, vector<64x256xf32> -> vector<576x256xf32>
    %cst_36 = arith.constant dense<0.000000e+00> : vector<32x256xf32>
    %39 = tpu.matmul %10, %38, %cst_36 {dimension_numbers = #tpu.dot_dimension_numbers<[1], [0], [0], [1], [0, 0, 1, 1], [], []>} : vector<32x576xf32>, vector<576x256xf32>, vector<32x256xf32> -> vector<32x256xf32>
    %40 = vector.broadcast %11 : vector<32x1xf32> to vector<32x256xf32>
    %41 = arith.addf %39, %40 : vector<32x256xf32>
    %cst_37 = arith.constant 0.000000e+00 : f32
    %42 = vector.broadcast %cst_37 : f32 to vector<32x256xf32>
    %43 = arith.maximumf %41, %42 : vector<32x256xf32>
    %c0_38 = arith.constant 0 : index
    %c17_39 = arith.constant 17 : index
    %44 = vector.load %arg9[%c0_38, %c17_39] : memref<32x290xf32, #tpu.memory_space<vmem>>, vector<32x256xf32>
    tpu.vector_store %arg9[%c0_38, %c17_39], %43 {strides = array<i32>} : memref<32x290xf32, #tpu.memory_space<vmem>>, vector<32x256xf32>,
    %c0_40 = arith.constant 0 : index
    %c0_41 = arith.constant 0 : index
    %45 = vector.load %arg9[%c0_40, %c0_41] : memref<32x290xf32, #tpu.memory_space<vmem>>, vector<32x256xf32>
    %46 = vector.broadcast %8 : vector<1x256xf32> to vector<32x256xf32>
    %47 = arith.mulf %45, %46 : vector<32x256xf32>
    %c0_42 = arith.constant 0 : index
    %c1_43 = arith.constant 1 : index
    %48 = vector.load %arg9[%c0_42, %c1_43] : memref<32x290xf32, #tpu.memory_space<vmem>>, vector<32x256xf32>
    %c0_44 = arith.constant 0 : index
    %c2_45 = arith.constant 2 : index
    %49 = vector.load %arg9[%c0_44, %c2_45] : memref<32x290xf32, #tpu.memory_space<vmem>>, vector<32x256xf32>
    %50 = vector.broadcast %9 : vector<1x256xf32> to vector<32x256xf32>
    %51 = arith.mulf %49, %50 : vector<32x256xf32>
    %c0_46 = arith.constant 0 : index
    %c16_47 = arith.constant 16 : index
    %52 = vector.load %arg9[%c0_46, %c16_47] : memref<32x290xf32, #tpu.memory_space<vmem>>, vector<32x256xf32>
    %53 = vector.broadcast %8 : vector<1x256xf32> to vector<32x256xf32>
    %54 = arith.mulf %52, %53 : vector<32x256xf32>
    %c0_48 = arith.constant 0 : index
    %c17_49 = arith.constant 17 : index
    %55 = vector.load %arg9[%c0_48, %c17_49] : memref<32x290xf32, #tpu.memory_space<vmem>>, vector<32x256xf32>
    %c0_50 = arith.constant 0 : index
    %c18_51 = arith.constant 18 : index
    %56 = vector.load %arg9[%c0_50, %c18_51] : memref<32x290xf32, #tpu.memory_space<vmem>>, vector<32x256xf32>
    %57 = vector.broadcast %9 : vector<1x256xf32> to vector<32x256xf32>
    %58 = arith.mulf %56, %57 : vector<32x256xf32>
    %c0_52 = arith.constant 0 : index
    %c32_53 = arith.constant 32 : index
    %59 = vector.load %arg9[%c0_52, %c32_53] : memref<32x290xf32, #tpu.memory_space<vmem>>, vector<32x256xf32>
    %60 = vector.broadcast %8 : vector<1x256xf32> to vector<32x256xf32>
    %61 = arith.mulf %59, %60 : vector<32x256xf32>
    %c0_54 = arith.constant 0 : index
    %c33_55 = arith.constant 33 : index
    %62 = vector.load %arg9[%c0_54, %c33_55] : memref<32x290xf32, #tpu.memory_space<vmem>>, vector<32x256xf32>
    %c0_56 = arith.constant 0 : index
    %c34_57 = arith.constant 34 : index
    %63 = vector.load %arg9[%c0_56, %c34_57] : memref<32x290xf32, #tpu.memory_space<vmem>>, vector<32x256xf32>
    %64 = vector.broadcast %9 : vector<1x256xf32> to vector<32x256xf32>
    %65 = arith.mulf %63, %64 : vector<32x256xf32>
    %66 = tpu.concatenate %47, %48, %51, %54, %55, %58, %61, %62, %65 in 0 : vector<32x256xf32>, vector<32x256xf32>, vector<32x256xf32>, vector<32x256xf32>, vector<32x256xf32>, vector<32x256xf32>, vector<32x256xf32>, vector<32x256xf32>, vector<32x256xf32> -> vector<288x256xf32>
    %cst_58 = arith.constant dense<0.000000e+00> : vector<2x256xf32>
    %67 = tpu.matmul %12, %66, %cst_58 {dimension_numbers = #tpu.dot_dimension_numbers<[1], [0], [0], [1], [0, 0, 1, 1], [], []>} : vector<2x288xf32>, vector<288x256xf32>, vector<2x256xf32> -> vector<2x256xf32>
    %68 = vector.broadcast %13 : vector<2x1xf32> to vector<2x256xf32>
    %69 = arith.addf %67, %68 : vector<2x256xf32>
    %c0_59 = arith.constant 0 : index
    %c0_60 = arith.constant 0 : index
    %c0_61 = arith.constant 0 : index
    %70 = vector.load %arg7[%c0_59, %c0_60, %c0_61] : memref<1x2x256xf32, #tpu.memory_space<vmem>>, vector<1x2x256xf32>
    %71 = vector.shape_cast %70 : vector<1x2x256xf32> to vector<2x256xf32>
    %72 = vector.shape_cast %69 : vector<2x256xf32> to vector<1x2x256xf32>
    tpu.vector_store %arg7[%c0_59, %c0_60, %c0_61], %72 {strides = array<i32>} : memref<1x2x256xf32, #tpu.memory_space<vmem>>, vector<1x2x256xf32>,
    return
  }
  func.func @transform_0(%arg0: i32) -> (i32, i32, i32) {
    %c0_i32 = arith.constant 0 : i32
    %c0_i32_0 = arith.constant 0 : i32
    %c0_i32_1 = arith.constant 0 : i32
    return %arg0, %c0_i32, %c0_i32_0 : i32, i32, i32
  }
  func.func @transform_1(%arg0: i32) -> (i32, i32) {
    %c0_i32 = arith.constant 0 : i32
    %c0_i32_0 = arith.constant 0 : i32
    %c0_i32_1 = arith.constant 0 : i32
    return %c0_i32, %c0_i32_0 : i32, i32
  }
  func.func @transform_2(%arg0: i32) -> (i32, i32) {
    %c0_i32 = arith.constant 0 : i32
    %c0_i32_0 = arith.constant 0 : i32
    %c0_i32_1 = arith.constant 0 : i32
    return %c0_i32, %c0_i32_0 : i32, i32
  }
  func.func @transform_3(%arg0: i32) -> (i32, i32) {
    %c0_i32 = arith.constant 0 : i32
    %c0_i32_0 = arith.constant 0 : i32
    %c0_i32_1 = arith.constant 0 : i32
    return %c0_i32, %c0_i32_0 : i32, i32
  }
  func.func @transform_4(%arg0: i32) -> (i32, i32) {
    %c0_i32 = arith.constant 0 : i32
    %c0_i32_0 = arith.constant 0 : i32
    %c0_i32_1 = arith.constant 0 : i32
    return %c0_i32, %c0_i32_0 : i32, i32
  }
  func.func @transform_5(%arg0: i32) -> (i32, i32) {
    %c0_i32 = arith.constant 0 : i32
    %c0_i32_0 = arith.constant 0 : i32
    %c0_i32_1 = arith.constant 0 : i32
    return %c0_i32, %c0_i32_0 : i32, i32
  }
  func.func @transform_6(%arg0: i32) -> (i32, i32, i32) {
    %c0_i32 = arith.constant 0 : i32
    %c0_i32_0 = arith.constant 0 : i32
    %c0_i32_1 = arith.constant 0 : i32
    return %arg0, %c0_i32, %c0_i32_0 : i32, i32, i32
  }
}

</mosaic_0001>

<llo_original>
// kernel: tpu_custom_call.1
$region0: #{tpu_custom_call.1}
  #allocation0 [shape = 'u32[]', space=smem, size = 0x4, offset = 0x4, fixed_abs, tag = 'smem constant byte address 0x4 - core index']
  #allocation1 [shape = 'u32[144,128]{1,0:T(1,128)}', space=vmem, size = 0x12000, scoped, tag = 'internal scratch']
  #allocation2 [shape = 'f32[64,290]{1,0:T(8,128)}', space=vmem, size = 0x18000, scoped, tag = 'scratch operand']
  #allocation3 [shape = 'f32[32,290]{1,0:T(8,128)}', space=vmem, size = 0xc000, scoped, tag = 'scratch operand']
  %s0 = inlined_call_operand.hbm [shape: f32[2,64,256], index: 0, kind: input, shape index: {}]
  %s1 = inlined_call_operand.hbm [shape: f32[32,576], index: 1, kind: input, shape index: {}]
  %s2 = inlined_call_operand.vmem [shape: f32[32,1], index: 2, kind: input, shape index: {}]
  %s3 = inlined_call_operand.vmem [shape: f32[2,288], index: 3, kind: input, shape index: {}]
  %s4 = inlined_call_operand.vmem [shape: f32[2,1], index: 4, kind: input, shape index: {}]
  %s5 = inlined_call_operand.vmem [shape: f32[2,256], index: 5, kind: input, shape index: {}]
  %s6 = inlined_call_operand.hbm [shape: f32[2,2,256], index: 6, kind: output, shape index: {}]
  %s7 = sld [smem:[#allocation0]]
  $region65: #{tpu_custom_call.1} parent=0
    _
  %s9 = ssub.s32 1, %s7
  %s10 = scalar_select 0, %s9, %s7
  $region1: #{tpu_custom_call.1} parent=0
    #allocation4 [shape = 'u8[131072]{0}', space=vmem, size = 0x20000, scoped, tag = 'input window, operand 0']
    #allocation5 [shape = 's32[2]{0}', space=sflag, size = 0x8, scoped, tag = 'scoped memory for tpu_custom_call.1']
    #allocation6 [shape = 's32[2]{0}', space=sflag, size = 0x8, scoped, tag = 'scoped memory for tpu_custom_call.1']
    #allocation7 [shape = 'u8[81920]{0}', space=vmem, size = 0x14000, scoped, tag = 'input window, operand 1, single buffered']
    #allocation8 [shape = 's32[1]{0}', space=sflag, size = 0x4, scoped, tag = 'scoped memory for tpu_custom_call.1']
    #allocation9 [shape = 'u8[4096]{0}', space=vmem, size = 0x1000, scoped, tag = 'output window, operand 0']
    %11 = vsyncpa [#allocation5], 0
    %s12 = scalar_lea.sflag [#allocation5], 1
    %13 = vsyncpa %s12, 0
    %14 = vsyncpa [#allocation8], 0
    %15 = vsyncpa [#allocation6], 0
    %s16 = scalar_lea.sflag [#allocation6], 1
    %17 = vsyncpa %s16, 0
    loop: start=0, step=1, limit=4
    $region2: #{tpu_custom_call.1} parent=1 // loop_pre_header
      _
    $region3: #{tpu_custom_call.1} parent=1 // loop_header
      %s19 = sphi 0, %s23
      %p20 = scmp.ge.s32.totalorder %s19, 4
      %s29 = sphi 0, %s31
      %s32 = sphi 0, %s29
      %s33 = sphi 0, %s32
      %s49 = sphi 0, %s33
      %s53 = sphi 0, %s53
      %s55 = sphi 0, %s53
      %s56 = sphi 0, %s55
      %s70 = sphi 0, %s56
      %s74 = sphi 0, %s74
      %s76 = sphi 0, %s74
      %s77 = sphi 0, %s76
      %s91 = sphi 0, %s77
      %s95 = sphi 0, %s95
      %s97 = sphi 0, %s95
      %s98 = sphi 0, %s97
      %s112 = sphi 0, %s98
      %s116 = sphi 0, %s116
      %s118 = sphi 0, %s116
      %s119 = sphi 0, %s118
      %s133 = sphi 0, %s119
      %s137 = sphi 0, %s137
      %s139 = sphi 0, %s137
      %s140 = sphi 0, %s139
      %s154 = sphi 0, %s140
      %s160 = sphi 0, %s162
      %s163 = sphi 0, %s160
      %s164 = sphi 0, %s163
      %s180 = sphi 0, %s164
    $region4: #{tpu_custom_call.1} parent=1 // loop_header_branch
      %22 = sbr.rel (%p20) target = $region8
    $region5: #{tpu_custom_call.1} parent=1 // loop_body
      %s24 = ssub.s32 %s19, 1
      %s25 = ssub.s32 %s19, 2
      %s26 = sadd.s32 %s19, 1
      %s27 = ssub.s32 %s19, %s26
      %p28 = scmp.eq.s32.totalorder %s27, 0
      %s30 = sadd.s32 %s29, 1
      %s31 = scalar_select %p28, %s29, %s30
      %p34 = pneg %p28
      %p35 = scmp.eq.s32.totalorder %s19, 1
      %p36 = por %p34, %p35
      %p37 = scmp.ne.s32.totalorder %s29, %s32
      %p38 = scmp.eq.s32.totalorder %s19, 0
      %p39 = por %p37, %p38
      %p40 = scmp.ne.s32.totalorder %s29, %s32
      %p41 = scmp.eq.s32.totalorder %s24, 1
      %p42 = por %p40, %p41
      %p43 = scmp.ne.s32.totalorder %s32, %s33
      %p44 = scmp.eq.s32.totalorder %s24, 0
      %p45 = por %p43, %p44
      %p46 = scmp.ne.s32.totalorder %s32, %s33
      %p47 = scmp.eq.s32.totalorder %s25, 1
      %p48 = por %p46, %p47
      %p50 = scmp.ne.s32.totalorder %s33, %s49
      %p51 = scmp.eq.s32.totalorder %s25, 0
      %p52 = por %p50, %p51
      %s54 = sadd.s32 %s53, 1
      %p57 = scmp.eq.s32.totalorder %s19, 1
      %p58 = scmp.ne.s32.totalorder %s53, %s55
      %p59 = scmp.eq.s32.totalorder %s19, 0
      %p60 = por %p58, %p59
      %p61 = scmp.ne.s32.totalorder %s53, %s55
      %p62 = scmp.eq.s32.totalorder %s24, 1
      %p63 = por %p61, %p62
      %p64 = scmp.ne.s32.totalorder %s55, %s56
      %p65 = scmp.eq.s32.totalorder %s24, 0
      %p66 = por %p64, %p65
      %p67 = scmp.ne.s32.totalorder %s55, %s56
      %p68 = scmp.eq.s32.totalorder %s25, 1
      %p69 = por %p67, %p68
      %p71 = scmp.ne.s32.totalorder %s56, %s70
      %p72 = scmp.eq.s32.totalorder %s25, 0
      %p73 = por %p71, %p72
      %s75 = sadd.s32 %s74, 1
      %p78 = scmp.eq.s32.totalorder %s19, 1
      %p79 = scmp.ne.s32.totalorder %s74, %s76
      %p80 = scmp.eq.s32.totalorder %s19, 0
      %p81 = por %p79, %p80
      %p82 = scmp.ne.s32.totalorder %s74, %s76
      %p83 = scmp.eq.s32.totalorder %s24, 1
      %p84 = por %p82, %p83
      %p85 = scmp.ne.s32.totalorder %s76, %s77
      %p86 = scmp.eq.s32.totalorder %s24, 0
      %p87 = por %p85, %p86
      %p88 = scmp.ne.s32.totalorder %s76, %s77
      %p89 = scmp.eq.s32.totalorder %s25, 1
      %p90 = por %p88, %p89
      %p92 = scmp.ne.s32.totalorder %s77, %s91
      %p93 = scmp.eq.s32.totalorder %s25, 0
      %p94 = por %p92, %p93
      %s96 = sadd.s32 %s95, 1
      %p99 = scmp.eq.s32.totalorder %s19, 1
      %p100 = scmp.ne.s32.totalorder %s95, %s97
      %p101 = scmp.eq.s32.totalorder %s19, 0
      %p102 = por %p100, %p101
      %p103 = scmp.ne.s32.totalorder %s95, %s97
      %p104 = scmp.eq.s32.totalorder %s24, 1
      %p105 = por %p103, %p104
      %p106 = scmp.ne.s32.totalorder %s97, %s98
      %p107 = scmp.eq.s32.totalorder %s24, 0
      %p108 = por %p106, %p107
      %p109 = scmp.ne.s32.totalorder %s97, %s98
      %p110 = scmp.eq.s32.totalorder %s25, 1
      %p111 = por %p109, %p110
      %p113 = scmp.ne.s32.totalorder %s98, %s112
      %p114 = scmp.eq.s32.totalorder %s25, 0
      %p115 = por %p113, %p114
      %s117 = sadd.s32 %s116, 1
      %p120 = scmp.eq.s32.totalorder %s19, 1
      %p121 = scmp.ne.s32.totalorder %s116, %s118
      %p122 = scmp.eq.s32.totalorder %s19, 0
      %p123 = por %p121, %p122
      %p124 = scmp.ne.s32.totalorder %s116, %s118
      %p125 = scmp.eq.s32.totalorder %s24, 1
      %p126 = por %p124, %p125
      %p127 = scmp.ne.s32.totalorder %s118, %s119
      %p128 = scmp.eq.s32.totalorder %s24, 0
      %p129 = por %p127, %p128
      %p130 = scmp.ne.s32.totalorder %s118, %s119
      %p131 = scmp.eq.s32.totalorder %s25, 1
      %p132 = por %p130, %p131
      %p134 = scmp.ne.s32.totalorder %s119, %s133
      %p135 = scmp.eq.s32.totalorder %s25, 0
      %p136 = por %p134, %p135
      %s138 = sadd.s32 %s137, 1
      %p141 = scmp.eq.s32.totalorder %s19, 1
      %p142 = scmp.ne.s32.totalorder %s137, %s139
      %p143 = scmp.eq.s32.totalorder %s19, 0
      %p144 = por %p142, %p143
      %p145 = scmp.ne.s32.totalorder %s137, %s139
      %p146 = scmp.eq.s32.totalorder %s24, 1
      %p147 = por %p145, %p146
      %p148 = scmp.ne.s32.totalorder %s139, %s140
      %p149 = scmp.eq.s32.totalorder %s24, 0
      %p150 = por %p148, %p149
      %p151 = scmp.ne.s32.totalorder %s139, %s140
      %p152 = scmp.eq.s32.totalorder %s25, 1
      %p153 = por %p151, %p152
      %p155 = scmp.ne.s32.totalorder %s140, %s154
      %p156 = scmp.eq.s32.totalorder %s25, 0
      %p157 = por %p155, %p156
      %s158 = ssub.s32 %s19, %s26
      %p159 = scmp.eq.s32.totalorder %s158, 0
      %s161 = sadd.s32 %s160, 1
      %s162 = scalar_select %p159, %s160, %s161
      %p165 = pneg %p159
      %p166 = scmp.eq.s32.totalorder %s19, 1
      %p167 = por %p165, %p166
      %p168 = scmp.ne.s32.totalorder %s160, %s163
      %p169 = scmp.eq.s32.totalorder %s19, 0
      %p170 = por %p168, %p169
      %p171 = scmp.ne.s32.totalorder %s160, %s163
      %p172 = scmp.eq.s32.totalorder %s24, 1
      %p173 = por %p171, %p172
      %p174 = scmp.ne.s32.totalorder %s163, %s164
      %p175 = scmp.eq.s32.totalorder %s24, 0
      %p176 = por %p174, %p175
      %p177 = scmp.ne.s32.totalorder %s163, %s164
      %p178 = scmp.eq.s32.totalorder %s25, 1
      %p179 = por %p177, %p178
      %p181 = scmp.ne.s32.totalorder %s164, %s180
      %p182 = scmp.eq.s32.totalorder %s25, 0
      %p183 = por %p181, %p182
      %p184 = scmp.le.s32.totalorder 1, %s19
      %p185 = scmp.lt.s32.totalorder %s19, 3
      %p186 = pnand %p184, %p185
      %p187 = pneg %p186
      // Predicated region
      $region9: #{tpu_custom_call.1} parent=5 // pred_check
        _
      $region10: #{tpu_custom_call.1} parent=5 // pred_check_branch
        %189 = sbr.rel (%p186) target = $region12
      $region11: #{tpu_custom_call.1} parent=5 // pred_region
        %s190 = ssub.s32 %s19, 1
        // Predicated region
        $region13: #{tpu_custom_call.1} parent=11 // pred_check
          %p191 = pneg %p66
        $region14: #{tpu_custom_call.1} parent=11 // pred_check_branch
          %193 = sbr.rel (%p191) target = $region16
        $region15: #{tpu_custom_call.1} parent=11 // pred_region
          %s195 = ssub.s32 2560, 2560
          %196 = vsyncadd [#allocation8], %s195
          %s197 = sshll.u32 [#allocation7], 4
          %s198 = int_to_ptr.vmem [resolvable:$true] %s197
          %203 = dma.hbm_to_vmem [thread:$0]  %s1, 2560, %s198, [#allocation8], 640, 640, 40
        $region16: #{tpu_custom_call.1} parent=11 // pred_fallthru
          _
        // Predicated region
        $region17: #{tpu_custom_call.1} parent=11 // pred_check
          %p204 = pneg %p87
        $region18: #{tpu_custom_call.1} parent=11 // pred_check_branch
          %206 = sbr.rel (%p204) target = $region20
        $region19: #{tpu_custom_call.1} parent=11 // pred_region
          _
        $region20: #{tpu_custom_call.1} parent=11 // pred_fallthru
          _
        // Predicated region
        $region21: #{tpu_custom_call.1} parent=11 // pred_check
          %p207 = pneg %p108
        $region22: #{tpu_custom_call.1} parent=11 // pred_check_branch
          %209 = sbr.rel (%p207) target = $region24
        $region23: #{tpu_custom_call.1} parent=11 // pred_region
          _
        $region24: #{tpu_custom_call.1} parent=11 // pred_fallthru
          _
        // Predicated region
        $region25: #{tpu_custom_call.1} parent=11 // pred_check
          %p210 = pneg %p129
        $region26: #{tpu_custom_call.1} parent=11 // pred_check_branch
          %212 = sbr.rel (%p210) target = $region28
        $region27: #{tpu_custom_call.1} parent=11 // pred_region
          _
        $region28: #{tpu_custom_call.1} parent=11 // pred_fallthru
          _
        // Predicated region
        $region29: #{tpu_custom_call.1} parent=11 // pred_check
          %p213 = pneg %p150
        $region30: #{tpu_custom_call.1} parent=11 // pred_check_branch
          %215 = sbr.rel (%p213) target = $region32
        $region31: #{tpu_custom_call.1} parent=11 // pred_region
          _
        $region32: #{tpu_custom_call.1} parent=11 // pred_fallthru
          _
      $region12: #{tpu_custom_call.1} parent=5 // pred_fallthru
        _
      %p216 = scmp.lt.s32.totalorder %s19, 2
      // Predicated region
      $region33: #{tpu_custom_call.1} parent=5 // pred_check
        %p217 = pneg %p216
      $region34: #{tpu_custom_call.1} parent=5 // pred_check_branch
        %219 = sbr.rel (%p217) target = $region36
      $region35: #{tpu_custom_call.1} parent=5 // pred_region
        // Predicated region
        $region37: #{tpu_custom_call.1} parent=35 // pred_check
          %p220 = pneg %p39
        $region38: #{tpu_custom_call.1} parent=35 // pred_check_branch
          %222 = sbr.rel (%p220) target = $region40
        $region39: #{tpu_custom_call.1} parent=35 // pred_region
          %s223 = sand.u32 %s29, 1
          %s224 = scalar_lea.sflag [#allocation5], %s223
          %s225 = sand.u32 %s29, 1
          %s226 = smul.addr %s225, 128
          %s227 = scalar_lea.vmem [#allocation4], %s226
          %s229 = ssub.s32 2048, 2048
          %230 = vsyncadd %s224, %s229
          %s231 = smul.addr %s19, 16
          %s232 = smul.addr %s231, 128
          %s233 = scalar_lea.hbm %s0, %s232
          %s234 = sshll.u32 %s227, 4
          %s235 = int_to_ptr.vmem [resolvable:$true] %s234
          %240 = dma.hbm_to_vmem [thread:$0]  %s233, 2048, %s235, %s224, 256, 256, 16
        $region40: #{tpu_custom_call.1} parent=35 // pred_fallthru
          _
      $region36: #{tpu_custom_call.1} parent=5 // pred_fallthru
        _
      %p241 = scmp.le.s32.totalorder 1, %s19
      %p242 = scmp.lt.s32.totalorder %s19, 3
      %p243 = pnand %p241, %p242
      %p244 = pneg %p243
      // Predicated region
      $region41: #{tpu_custom_call.1} parent=5 // pred_check
        _
      $region42: #{tpu_custom_call.1} parent=5 // pred_check_branch
        %246 = sbr.rel (%p243) target = $region44
      $region43: #{tpu_custom_call.1} parent=5 // pred_region
        %s247 = ssub.s32 %s19, 1
        %s248 = sand.u32 %s32, 1
        %s249 = scalar_lea.sflag [#allocation5], %s248
        %s250 = sand.u32 %s32, 1
        %s251 = smul.addr %s250, 128
        %s252 = scalar_lea.vmem [#allocation4], %s251
        // Predicated region
        $region45: #{tpu_custom_call.1} parent=43 // pred_check
          %p253 = pneg %p45
        $region46: #{tpu_custom_call.1} parent=43 // pred_check_branch
          %255 = sbr.rel (%p253) target = $region48
        $region47: #{tpu_custom_call.1} parent=43 // pred_region
          %256 = dma.done %s249, 2048
        $region48: #{tpu_custom_call.1} parent=43 // pred_fallthru
          _
        // Predicated region
        $region49: #{tpu_custom_call.1} parent=43 // pred_check
          %p257 = pneg %p66
        $region50: #{tpu_custom_call.1} parent=43 // pred_check_branch
          %259 = sbr.rel (%p257) target = $region52
        $region51: #{tpu_custom_call.1} parent=43 // pred_region
          %260 = dma.done [#allocation8], 2560
        $region52: #{tpu_custom_call.1} parent=43 // pred_fallthru
          _
        %s261 = sand.u32 %s32, 1
        %s262 = scalar_lea.sflag [#allocation5], %s261
        %s263 = sand.u32 %s32, 1
        %s264 = smul.addr %s263, 128
        %s265 = scalar_lea.vmem [#allocation4], %s264
        %p266 = pneg %p45
        %p267 = pneg %p42
        %p268 = pneg %p66
        %p269 = pneg %p63
        %p270 = pneg %p87
        %p271 = pneg %p84
        %p272 = pneg %p108
        %p273 = pneg %p105
        %p274 = pneg %p129
        %p275 = pneg %p126
        %p276 = pneg %p150
        %p277 = pneg %p147
        %p278 = pneg %p176
        %p279 = pneg %p173
        %s280 = sand.u32 %s163, 1
        %s281 = scalar_lea.sflag [#allocation6], %s280
        %s282 = sand.u32 %s163, 1
        %s283 = smul.addr %s282, 4
        %s284 = scalar_lea.vmem [#allocation9], %s283
        %vm285 = vcmask 138240
        %286 = vst.msk [vmem:[#allocation2] sm:$0xff] %vm285, 0.0
        %287 = vst.msk [vmem:[#allocation2 + $0x18] sm:$0xff] %vm285, 0.0
        %288 = vst.msk [vmem:[#allocation2 + $0x30] sm:$0xff] %vm285, 0.0
        %289 = vst.msk [vmem:[#allocation2 + $0x48] sm:$0xff] %vm285, 0.0
        %290 = vst.msk [vmem:[#allocation2 + $0x60] sm:$0xff] %vm285, 0.0
        %291 = vst.msk [vmem:[#allocation2 + $0x78] sm:$0xff] %vm285, 0.0
        %292 = vst.msk [vmem:[#allocation2 + $0x90] sm:$0xff] %vm285, 0.0
        %293 = vst.msk [vmem:[#allocation2 + $0xa8] sm:$0xff] %vm285, 0.0
        %vm294 = vcmask 277640
        %295 = vst.msk [vmem:[#allocation2 + $0x10] sm:$0xff] %vm294, 0.0
        %296 = vst.msk [vmem:[#allocation2 + $0x28] sm:$0xff] %vm294, 0.0
        %297 = vst.msk [vmem:[#allocation2 + $0x40] sm:$0xff] %vm294, 0.0
        %298 = vst.msk [vmem:[#allocation2 + $0x58] sm:$0xff] %vm294, 0.0
        %299 = vst.msk [vmem:[#allocation2 + $0x70] sm:$0xff] %vm294, 0.0
        %300 = vst.msk [vmem:[#allocation2 + $0x88] sm:$0xff] %vm294, 0.0
        %301 = vst.msk [vmem:[#allocation2 + $0xa0] sm:$0xff] %vm294, 0.0
        %302 = vst.msk [vmem:[#allocation2 + $0xb8] sm:$0xff] %vm294, 0.0
        %303 = vst.msk [vmem:[#allocation3] sm:$0xff] %vm285, 0.0
        %304 = vst.msk [vmem:[#allocation3 + $0x18] sm:$0xff] %vm285, 0.0
        %305 = vst.msk [vmem:[#allocation3 + $0x30] sm:$0xff] %vm285, 0.0
        %306 = vst.msk [vmem:[#allocation3 + $0x48] sm:$0xff] %vm285, 0.0
        %307 = vst.msk [vmem:[#allocation3 + $0x10] sm:$0xff] %vm294, 0.0
        %308 = vst.msk [vmem:[#allocation3 + $0x28] sm:$0xff] %vm294, 0.0
        %309 = vst.msk [vmem:[#allocation3 + $0x40] sm:$0xff] %vm294, 0.0
        %310 = vst.msk [vmem:[#allocation3 + $0x58] sm:$0xff] %vm294, 0.0
        %v311 = vld [vmem:[%s5] ss:$2 sm:$0x3]
        %s312 = scalar_lea.vmem %s5, 1
        %v313 = vld [vmem:[%s312] ss:$2 sm:$0x3]
        %v314 = vld [vmem:[#allocation7] sm:$0xff]
        %v315 = vld [vmem:[#allocation7 + $0x8] sm:$0xff]
        %v316 = vld [vmem:[#allocation7 + $0x10] sm:$0xff]
        %v317 = vld [vmem:[#allocation7 + $0x18] sm:$0xff]
        %v318 = vld [vmem:[#allocation7 + $0x20] sm:$0xff]
        %v319 = vld [vmem:[#allocation7 + $0x28] sm:$0xff]
        %v320 = vld [vmem:[#allocation7 + $0x30] sm:$0xff]
        %v321 = vld [vmem:[#allocation7 + $0x38] sm:$0xff]
        %v322 = vld [vmem:[#allocation7 + $0x40] sm:$0xff]
        %v323 = vld [vmem:[#allocation7 + $0x48] sm:$0xff]
        %v324 = vld [vmem:[#allocation7 + $0x50] sm:$0xff]
        %v325 = vld [vmem:[#allocation7 + $0x58] sm:$0xff]
        %v326 = vld [vmem:[#allocation7 + $0x60] sm:$0xff]
        %v327 = vld [vmem:[#allocation7 + $0x68] sm:$0xff]
        %v328 = vld [vmem:[#allocation7 + $0x70] sm:$0xff]
        %v329 = vld [vmem:[#allocation7 + $0x78] sm:$0xff]
        %v330 = vld [vmem:[#allocation7 + $0x80] sm:$0xff]
        %v331 = vld [vmem:[#allocation7 + $0x88] sm:$0xff]
        %v332 = vld [vmem:[#allocation7 + $0x90] sm:$0xff]
        %v333 = vld [vmem:[#allocation7 + $0x98] sm:$0xff]
        %v334 = vld [vmem:[%s2] sm:$0xff]
        %v335 = vld [vmem:[%s2 + $0x8] sm:$0xff]
        %v336 = vld [vmem:[%s2 + $0x10] sm:$0xff]
        %v337 = vld [vmem:[%s2 + $0x18] sm:$0xff]
        %v338 = vld [vmem:[%s3] sm:$0x3f]
        %v339 = vld [vmem:[%s4] sm:$0x3]
        %v340 = vld [vmem:[%s252] sm:$0xff]
        %v341 = vld [vmem:[%s252 + $0x8] sm:$0xff]
        %v342 = vld [vmem:[%s252 + $0x10] sm:$0xff]
        %v343 = vld [vmem:[%s252 + $0x18] sm:$0xff]
        %v344 = vld [vmem:[%s252 + $0x20] sm:$0xff]
        %v345 = vld [vmem:[%s252 + $0x28] sm:$0xff]
        %v346 = vld [vmem:[%s252 + $0x30] sm:$0xff]
        %v347 = vld [vmem:[%s252 + $0x38] sm:$0xff]
        %v348 = vld [vmem:[%s252 + $0x40] sm:$0xff]
        %v349 = vld [vmem:[%s252 + $0x48] sm:$0xff]
        %v350 = vld [vmem:[%s252 + $0x50] sm:$0xff]
        %v351 = vld [vmem:[%s252 + $0x58] sm:$0xff]
        %v352 = vld [vmem:[%s252 + $0x60] sm:$0xff]
        %v353 = vld [vmem:[%s252 + $0x68] sm:$0xff]
        %v354 = vld [vmem:[%s252 + $0x70] sm:$0xff]
        %v355 = vld [vmem:[%s252 + $0x78] sm:$0xff]
        %372 = vrot.lane.b32.xlu0 %v340, 17
        %v373 = vpop.permute.xlu0 %372
        %374 = vrot.lane.b32.xlu0 %v341, 17
        %v375 = vpop.permute.xlu0 %374
        %376 = vrot.lane.b32.xlu0 %v342, 17
        %v377 = vpop.permute.xlu0 %376
        %378 = vrot.lane.b32.xlu0 %v343, 17
        %v379 = vpop.permute.xlu0 %378
        %380 = vrot.lane.b32.xlu0 %v344, 17
        %v381 = vpop.permute.xlu0 %380
        %382 = vrot.lane.b32.xlu0 %v345, 17
        %v383 = vpop.permute.xlu0 %382
        %384 = vrot.lane.b32.xlu0 %v346, 17
        %v385 = vpop.permute.xlu0 %384
        %386 = vrot.lane.b32.xlu0 %v347, 17
        %v387 = vpop.permute.xlu0 %386
        %388 = vrot.lane.b32.xlu0 %v348, 17
        %v389 = vpop.permute.xlu0 %388
        %390 = vrot.lane.b32.xlu0 %v349, 17
        %v391 = vpop.permute.xlu0 %390
        %392 = vrot.lane.b32.xlu0 %v350, 17
        %v393 = vpop.permute.xlu0 %392
        %394 = vrot.lane.b32.xlu0 %v351, 17
        %v395 = vpop.permute.xlu0 %394
        %396 = vrot.lane.b32.xlu0 %v352, 17
        %v397 = vpop.permute.xlu0 %396
        %398 = vrot.lane.b32.xlu0 %v353, 17
        %v399 = vpop.permute.xlu0 %398
        %400 = vrot.lane.b32.xlu0 %v354, 17
        %v401 = vpop.permute.xlu0 %400
        %402 = vrot.lane.b32.xlu0 %v355, 17
        %v403 = vpop.permute.xlu0 %402
        %v404 = vsel %vm285, %v373, %v375
        %v405 = vsel %vm285, %v377, %v379
        %v406 = vsel %vm285, %v381, %v383
        %v407 = vsel %vm285, %v385, %v387
        %v408 = vsel %vm285, %v389, %v391
        %v409 = vsel %vm285, %v393, %v395
        %v410 = vsel %vm285, %v397, %v399
        %v411 = vsel %vm285, %v401, %v403
        %vm436 = vcmask 1047688
        %437 = vst.msk [vmem:[#allocation2] sm:$0xff] %vm436, %v373
        %438 = vst [vmem:[#allocation2 + $0x8] sm:$0xff] %v404
        %439 = vst.msk [vmem:[#allocation2 + $0x10] sm:$0xff] %vm285, %v375
        %440 = vst.msk [vmem:[#allocation2 + $0x18] sm:$0xff] %vm436, %v377
        %441 = vst [vmem:[#allocation2 + $0x20] sm:$0xff] %v405
        %442 = vst.msk [vmem:[#allocation2 + $0x28] sm:$0xff] %vm285, %v379
        %443 = vst.msk [vmem:[#allocation2 + $0x30] sm:$0xff] %vm436, %v381
        %444 = vst [vmem:[#allocation2 + $0x38] sm:$0xff] %v406
        %445 = vst.msk [vmem:[#allocation2 + $0x40] sm:$0xff] %vm285, %v383
        %446 = vst.msk [vmem:[#allocation2 + $0x48] sm:$0xff] %vm436, %v385
        %447 = vst [vmem:[#allocation2 + $0x50] sm:$0xff] %v407
        %448 = vst.msk [vmem:[#allocation2 + $0x58] sm:$0xff] %vm285, %v387
        %449 = vst.msk [vmem:[#allocation2 + $0x60] sm:$0xff] %vm436, %v389
        %450 = vst [vmem:[#allocation2 + $0x68] sm:$0xff] %v408
        %451 = vst.msk [vmem:[#allocation2 + $0x70] sm:$0xff] %vm285, %v391
        %452 = vst.msk [vmem:[#allocation2 + $0x78] sm:$0xff] %vm436, %v393
        %453 = vst [vmem:[#allocation2 + $0x80] sm:$0xff] %v409
        %454 = vst.msk [vmem:[#allocation2 + $0x88] sm:$0xff] %vm285, %v395
        %455 = vst.msk [vmem:[#allocation2 + $0x90] sm:$0xff] %vm436, %v397
        %456 = vst [vmem:[#allocation2 + $0x98] sm:$0xff] %v410
        %457 = vst.msk [vmem:[#allocation2 + $0xa0] sm:$0xff] %vm285, %v399
        %458 = vst.msk [vmem:[#allocation2 + $0xa8] sm:$0xff] %vm436, %v401
        %459 = vst [vmem:[#allocation2 + $0xb0] sm:$0xff] %v411
        %460 = vst.msk [vmem:[#allocation2 + $0xb8] sm:$0xff] %vm285, %v403
        %v461 = vld [vmem:[#allocation2] sm:$0xff]
        %v462 = vld [vmem:[#allocation2 + $0x8] sm:$0xff]
        %v463 = vld [vmem:[#allocation2 + $0x18] sm:$0xff]
        %v464 = vld [vmem:[#allocation2 + $0x20] sm:$0xff]
        %v465 = vld [vmem:[#allocation2 + $0x30] sm:$0xff]
        %v466 = vld [vmem:[#allocation2 + $0x38] sm:$0xff]
        %v467 = vld [vmem:[#allocation2 + $0x48] sm:$0xff]
        %v468 = vld [vmem:[#allocation2 + $0x50] sm:$0xff]
        %v469 = vld [vmem:[#allocation2 + $0x60] sm:$0xff]
        %v470 = vld [vmem:[#allocation2 + $0x68] sm:$0xff]
        %v471 = vld [vmem:[#allocation2 + $0x78] sm:$0xff]
        %v472 = vld [vmem:[#allocation2 + $0x80] sm:$0xff]
        %v473 = vld [vmem:[#allocation2 + $0x90] sm:$0xff]
        %v474 = vld [vmem:[#allocation2 + $0x98] sm:$0xff]
        %v475 = vld [vmem:[#allocation2 + $0xa8] sm:$0xff]
        %v476 = vld [vmem:[#allocation2 + $0xb0] sm:$0xff]
        %v478 = vlaneseq
        %v479 = vshrl.u32 %v478, 7
        %v480 = vsub.s32 0, %v479
        %v481 = vrot.slane %v311, %v480
        %v482 = vlaneseq
        %v483 = vshrl.u32 %v482, 7
        %v484 = vsub.s32 1, %v483
        %v485 = vrot.slane %v311, %v484
        %v488 = vmul.f32 %v461, %v481
        %v489 = vmul.f32 %v462, %v485
        %v490 = vmul.f32 %v463, %v481
        %v491 = vmul.f32 %v464, %v485
        %v492 = vmul.f32 %v465, %v481
        %v493 = vmul.f32 %v466, %v485
        %v494 = vmul.f32 %v467, %v481
        %v495 = vmul.f32 %v468, %v485
        %v496 = vmul.f32 %v469, %v481
        %v497 = vmul.f32 %v470, %v485
        %v498 = vmul.f32 %v471, %v481
        %v499 = vmul.f32 %v472, %v485
        %v500 = vmul.f32 %v473, %v481
        %v501 = vmul.f32 %v474, %v485
        %v502 = vmul.f32 %v475, %v481
        %v503 = vmul.f32 %v476, %v485
        %v504 = vld [vmem:[#allocation2 + $0x10] sm:$0xff]
        %v505 = vld [vmem:[#allocation2 + $0x28] sm:$0xff]
        %v506 = vld [vmem:[#allocation2 + $0x40] sm:$0xff]
        %v507 = vld [vmem:[#allocation2 + $0x58] sm:$0xff]
        %v508 = vld [vmem:[#allocation2 + $0x70] sm:$0xff]
        %v509 = vld [vmem:[#allocation2 + $0x88] sm:$0xff]
        %v510 = vld [vmem:[#allocation2 + $0xa0] sm:$0xff]
        %v511 = vld [vmem:[#allocation2 + $0xb8] sm:$0xff]
        %v513 = vlaneseq
        %v514 = vshrl.u32 %v513, 7
        %v515 = vsub.s32 0, %v514
        %v516 = vrot.slane %v313, %v515
        %v517 = vlaneseq
        %v518 = vshrl.u32 %v517, 7
        %v519 = vsub.s32 1, %v518
        %v520 = vrot.slane %v313, %v519
        %521 = vrot.lane.b32.xlu0 %v516, 2
        %v522 = vpop.permute.xlu0 %521
        %523 = vrot.lane.b32.xlu0 %v520, 2
        %v524 = vpop.permute.xlu0 %523
        %vm525 = vcmask 15360
        %v526 = vsel %vm525, %v522, %v524
        %v530 = vmul.f32 %v461, %v522
        %v531 = vmul.f32 %v462, %v526
        %v532 = vmul.f32 %v504, %v524
        %v533 = vmul.f32 %v463, %v522
        %v534 = vmul.f32 %v464, %v526
        %v535 = vmul.f32 %v505, %v524
        %v536 = vmul.f32 %v465, %v522
        %v537 = vmul.f32 %v466, %v526
        %v538 = vmul.f32 %v506, %v524
        %v539 = vmul.f32 %v467, %v522
        %v540 = vmul.f32 %v468, %v526
        %v541 = vmul.f32 %v507, %v524
        %v542 = vmul.f32 %v469, %v522
        %v543 = vmul.f32 %v470, %v526
        %v544 = vmul.f32 %v508, %v524
        %v545 = vmul.f32 %v471, %v522
        %v546 = vmul.f32 %v472, %v526
        %v547 = vmul.f32 %v509, %v524
        %v548 = vmul.f32 %v473, %v522
        %v549 = vmul.f32 %v474, %v526
        %v550 = vmul.f32 %v510, %v524
        %v551 = vmul.f32 %v475, %v522
        %v552 = vmul.f32 %v476, %v526
        %v553 = vmul.f32 %v511, %v524
        %554 = vrot.lane.b32.xlu0 %v481, 16
        %v555 = vpop.permute.xlu0 %554
        %556 = vrot.lane.b32.xlu0 %v485, 16
        %v557 = vpop.permute.xlu0 %556
        %vm558 = vcmask 130048
        %v559 = vsel %vm558, %v555, %v557
        %v563 = vmul.f32 %v461, %v555
        %v564 = vmul.f32 %v462, %v559
        %v565 = vmul.f32 %v504, %v557
        %v566 = vmul.f32 %v463, %v555
        %v567 = vmul.f32 %v464, %v559
        %v568 = vmul.f32 %v505, %v557
        %v569 = vmul.f32 %v465, %v555
        %v570 = vmul.f32 %v466, %v559
        %v571 = vmul.f32 %v506, %v557
        %v572 = vmul.f32 %v467, %v555
        %v573 = vmul.f32 %v468, %v559
        %v574 = vmul.f32 %v507, %v557
        %v575 = vmul.f32 %v469, %v555
        %v576 = vmul.f32 %v470, %v559
        %v577 = vmul.f32 %v508, %v557
        %v578 = vmul.f32 %v471, %v555
        %v579 = vmul.f32 %v472, %v559
        %v580 = vmul.f32 %v509, %v557
        %v581 = vmul.f32 %v473, %v555
        %v582 = vmul.f32 %v474, %v559
        %v583 = vmul.f32 %v510, %v557
        %v584 = vmul.f32 %v475, %v555
        %v585 = vmul.f32 %v476, %v559
        %v586 = vmul.f32 %v511, %v557
        %587 = vrot.lane.b32.xlu0 %v516, 18
        %v588 = vpop.permute.xlu0 %587
        %589 = vrot.lane.b32.xlu0 %v520, 18
        %v590 = vpop.permute.xlu0 %589
        %vm591 = vcmask 146432
        %v592 = vsel %vm591, %v588, %v590
        %v596 = vmul.f32 %v461, %v588
        %v597 = vmul.f32 %v462, %v592
        %v598 = vmul.f32 %v504, %v590
        %v599 = vmul.f32 %v463, %v588
        %v600 = vmul.f32 %v464, %v592
        %v601 = vmul.f32 %v505, %v590
        %v602 = vmul.f32 %v465, %v588
        %v603 = vmul.f32 %v466, %v592
        %v604 = vmul.f32 %v506, %v590
        %v605 = vmul.f32 %v467, %v588
        %v606 = vmul.f32 %v468, %v592
        %v607 = vmul.f32 %v507, %v590
        %v608 = vmul.f32 %v469, %v588
        %v609 = vmul.f32 %v470, %v592
        %v610 = vmul.f32 %v508, %v590
        %v611 = vmul.f32 %v471, %v588
        %v612 = vmul.f32 %v472, %v592
        %v613 = vmul.f32 %v509, %v590
        %v614 = vmul.f32 %v473, %v588
        %v615 = vmul.f32 %v474, %v592
        %v616 = vmul.f32 %v510, %v590
        %v617 = vmul.f32 %v475, %v588
        %v618 = vmul.f32 %v476, %v592
        %v619 = vmul.f32 %v511, %v590
        %620 = vrot.lane.b32.xlu0 %v481, 32
        %v621 = vpop.permute.xlu0 %620
        %622 = vrot.lane.b32.xlu0 %v485, 32
        %v623 = vpop.permute.xlu0 %622
        %vm624 = vcmask 261120
        %v625 = vsel %vm624, %v621, %v623
        %v629 = vmul.f32 %v461, %v621
        %v630 = vmul.f32 %v462, %v625
        %v631 = vmul.f32 %v504, %v623
        %v632 = vmul.f32 %v463, %v621
        %v633 = vmul.f32 %v464, %v625
        %v634 = vmul.f32 %v505, %v623
        %v635 = vmul.f32 %v465, %v621
        %v636 = vmul.f32 %v466, %v625
        %v637 = vmul.f32 %v506, %v623
        %v638 = vmul.f32 %v467, %v621
        %v639 = vmul.f32 %v468, %v625
        %v640 = vmul.f32 %v507, %v623
        %v641 = vmul.f32 %v469, %v621
        %v642 = vmul.f32 %v470, %v625
        %v643 = vmul.f32 %v508, %v623
        %v644 = vmul.f32 %v471, %v621
        %v645 = vmul.f32 %v472, %v625
        %v646 = vmul.f32 %v509, %v623
        %v647 = vmul.f32 %v473, %v621
        %v648 = vmul.f32 %v474, %v625
        %v649 = vmul.f32 %v510, %v623
        %v650 = vmul.f32 %v475, %v621
        %v651 = vmul.f32 %v476, %v625
        %v652 = vmul.f32 %v511, %v623
        %653 = vrot.lane.b32.xlu0 %v516, 34
        %v654 = vpop.permute.xlu0 %653
        %655 = vrot.lane.b32.xlu0 %v520, 34
        %v656 = vpop.permute.xlu0 %655
        %vm657 = vcmask 277504
        %v658 = vsel %vm657, %v654, %v656
        %v662 = vmul.f32 %v461, %v654
        %v663 = vmul.f32 %v462, %v658
        %v664 = vmul.f32 %v504, %v656
        %v665 = vmul.f32 %v463, %v654
        %v666 = vmul.f32 %v464, %v658
        %v667 = vmul.f32 %v505, %v656
        %v668 = vmul.f32 %v465, %v654
        %v669 = vmul.f32 %v466, %v658
        %v670 = vmul.f32 %v506, %v656
        %v671 = vmul.f32 %v467, %v654
        %v672 = vmul.f32 %v468, %v658
        %v673 = vmul.f32 %v507, %v656
        %v674 = vmul.f32 %v469, %v654
        %v675 = vmul.f32 %v470, %v658
        %v676 = vmul.f32 %v508, %v656
        %v677 = vmul.f32 %v471, %v654
        %v678 = vmul.f32 %v472, %v658
        %v679 = vmul.f32 %v509, %v656
        %v680 = vmul.f32 %v473, %v654
        %v681 = vmul.f32 %v474, %v658
        %v682 = vmul.f32 %v510, %v656
        %v683 = vmul.f32 %v475, %v654
        %v684 = vmul.f32 %v476, %v658
        %v685 = vmul.f32 %v511, %v656
        %710 = vrot.lane.b32.xlu0 %v461, 127
        %v711 = vpop.permute.xlu0 %710
        %712 = vrot.lane.b32.xlu0 %v462, 127
        %v713 = vpop.permute.xlu0 %712
        %714 = vrot.lane.b32.xlu0 %v504, 127
        %v715 = vpop.permute.xlu0 %714
        %716 = vrot.lane.b32.xlu0 %v463, 127
        %v717 = vpop.permute.xlu0 %716
        %718 = vrot.lane.b32.xlu0 %v464, 127
        %v719 = vpop.permute.xlu0 %718
        %720 = vrot.lane.b32.xlu0 %v505, 127
        %v721 = vpop.permute.xlu0 %720
        %722 = vrot.lane.b32.xlu0 %v465, 127
        %v723 = vpop.permute.xlu0 %722
        %724 = vrot.lane.b32.xlu0 %v466, 127
        %v725 = vpop.permute.xlu0 %724
        %726 = vrot.lane.b32.xlu0 %v506, 127
        %v727 = vpop.permute.xlu0 %726
        %728 = vrot.lane.b32.xlu0 %v467, 127
        %v729 = vpop.permute.xlu0 %728
        %730 = vrot.lane.b32.xlu0 %v468, 127
        %v731 = vpop.permute.xlu0 %730
        %732 = vrot.lane.b32.xlu0 %v507, 127
        %v733 = vpop.permute.xlu0 %732
        %734 = vrot.lane.b32.xlu0 %v469, 127
        %v735 = vpop.permute.xlu0 %734
        %736 = vrot.lane.b32.xlu0 %v470, 127
        %v737 = vpop.permute.xlu0 %736
        %738 = vrot.lane.b32.xlu0 %v508, 127
        %v739 = vpop.permute.xlu0 %738
        %740 = vrot.lane.b32.xlu0 %v471, 127
        %v741 = vpop.permute.xlu0 %740
        %742 = vrot.lane.b32.xlu0 %v472, 127
        %v743 = vpop.permute.xlu0 %742
        %744 = vrot.lane.b32.xlu0 %v509, 127
        %v745 = vpop.permute.xlu0 %744
        %746 = vrot.lane.b32.xlu0 %v473, 127
        %v747 = vpop.permute.xlu0 %746
        %748 = vrot.lane.b32.xlu0 %v474, 127
        %v749 = vpop.permute.xlu0 %748
        %750 = vrot.lane.b32.xlu0 %v510, 127
        %v751 = vpop.permute.xlu0 %750
        %752 = vrot.lane.b32.xlu0 %v475, 127
        %v753 = vpop.permute.xlu0 %752
        %754 = vrot.lane.b32.xlu0 %v476, 127
        %v755 = vpop.permute.xlu0 %754
        %756 = vrot.lane.b32.xlu0 %v511, 127
        %v757 = vpop.permute.xlu0 %756
        %vm758 = vcmask 1039360
        %v759 = vsel %vm758, %v711, %v713
        %v760 = vsel %vm758, %v713, %v715
        %v761 = vsel %vm758, %v717, %v719
        %v762 = vsel %vm758, %v719, %v721
        %v763 = vsel %vm758, %v723, %v725
        %v764 = vsel %vm758, %v725, %v727
        %v765 = vsel %vm758, %v729, %v731
        %v766 = vsel %vm758, %v731, %v733
        %v767 = vsel %vm758, %v735, %v737
        %v768 = vsel %vm758, %v737, %v739
        %v769 = vsel %vm758, %v741, %v743
        %v770 = vsel %vm758, %v743, %v745
        %v771 = vsel %vm758, %v747, %v749
        %v772 = vsel %vm758, %v749, %v751
        %v773 = vsel %vm758, %v753, %v755
        %v774 = vsel %vm758, %v755, %v757
        %815 = vrot.lane.b32.xlu0 %v530, 126
        %v816 = vpop.permute.xlu0 %815
        %817 = vrot.lane.b32.xlu0 %v531, 126
        %v818 = vpop.permute.xlu0 %817
        %819 = vrot.lane.b32.xlu0 %v532, 126
        %v820 = vpop.permute.xlu0 %819
        %821 = vrot.lane.b32.xlu0 %v533, 126
        %v822 = vpop.permute.xlu0 %821
        %823 = vrot.lane.b32.xlu0 %v534, 126
        %v824 = vpop.permute.xlu0 %823
        %825 = vrot.lane.b32.xlu0 %v535, 126
        %v826 = vpop.permute.xlu0 %825
        %827 = vrot.lane.b32.xlu0 %v536, 126
        %v828 = vpop.permute.xlu0 %827
        %829 = vrot.lane.b32.xlu0 %v537, 126
        %v830 = vpop.permute.xlu0 %829
        %831 = vrot.lane.b32.xlu0 %v538, 126
        %v832 = vpop.permute.xlu0 %831
        %833 = vrot.lane.b32.xlu0 %v539, 126
        %v834 = vpop.permute.xlu0 %833
        %835 = vrot.lane.b32.xlu0 %v540, 126
        %v836 = vpop.permute.xlu0 %835
        %837 = vrot.lane.b32.xlu0 %v541, 126
        %v838 = vpop.permute.xlu0 %837
        %839 = vrot.lane.b32.xlu0 %v542, 126
        %v840 = vpop.permute.xlu0 %839
        %841 = vrot.lane.b32.xlu0 %v543, 126
        %v842 = vpop.permute.xlu0 %841
        %843 = vrot.lane.b32.xlu0 %v544, 126
        %v844 = vpop.permute.xlu0 %843
        %845 = vrot.lane.b32.xlu0 %v545, 126
        %v846 = vpop.permute.xlu0 %845
        %847 = vrot.lane.b32.xlu0 %v546, 126
        %v848 = vpop.permute.xlu0 %847
        %849 = vrot.lane.b32.xlu0 %v547, 126
        %v850 = vpop.permute.xlu0 %849
        %851 = vrot.lane.b32.xlu0 %v548, 126
        %v852 = vpop.permute.xlu0 %851
        %853 = vrot.lane.b32.xlu0 %v549, 126
        %v854 = vpop.permute.xlu0 %853
        %855 = vrot.lane.b32.xlu0 %v550, 126
        %v856 = vpop.permute.xlu0 %855
        %857 = vrot.lane.b32.xlu0 %v551, 126
        %v858 = vpop.permute.xlu0 %857
        %859 = vrot.lane.b32.xlu0 %v552, 126
        %v860 = vpop.permute.xlu0 %859
        %861 = vrot.lane.b32.xlu0 %v553, 126
        %v862 = vpop.permute.xlu0 %861
        %vm863 = vcmask 1031168
        %v864 = vsel %vm863, %v816, %v818
        %v865 = vsel %vm863, %v818, %v820
        %v866 = vsel %vm863, %v822, %v824
        %v867 = vsel %vm863, %v824, %v826
        %v868 = vsel %vm863, %v828, %v830
        %v869 = vsel %vm863, %v830, %v832
        %v870 = vsel %vm863, %v834, %v836
        %v871 = vsel %vm863, %v836, %v838
        %v872 = vsel %vm863, %v840, %v842
        %v873 = vsel %vm863, %v842, %v844
        %v874 = vsel %vm863, %v846, %v848
        %v875 = vsel %vm863, %v848, %v850
        %v876 = vsel %vm863, %v852, %v854
        %v877 = vsel %vm863, %v854, %v856
        %v878 = vsel %vm863, %v858, %v860
        %v879 = vsel %vm863, %v860, %v862
        %920 = vrot.lane.b32.xlu0 %v563, 112
        %v921 = vpop.permute.xlu0 %920
        %922 = vrot.lane.b32.xlu0 %v564, 112
        %v923 = vpop.permute.xlu0 %922
        %924 = vrot.lane.b32.xlu0 %v565, 112
        %v925 = vpop.permute.xlu0 %924
        %926 = vrot.lane.b32.xlu0 %v566, 112
        %v927 = vpop.permute.xlu0 %926
        %928 = vrot.lane.b32.xlu0 %v567, 112
        %v929 = vpop.permute.xlu0 %928
        %930 = vrot.lane.b32.xlu0 %v568, 112
        %v931 = vpop.permute.xlu0 %930
        %932 = vrot.lane.b32.xlu0 %v569, 112
        %v933 = vpop.permute.xlu0 %932
        %934 = vrot.lane.b32.xlu0 %v570, 112
        %v935 = vpop.permute.xlu0 %934
        %936 = vrot.lane.b32.xlu0 %v571, 112
        %v937 = vpop.permute.xlu0 %936
        %938 = vrot.lane.b32.xlu0 %v572, 112
        %v939 = vpop.permute.xlu0 %938
        %940 = vrot.lane.b32.xlu0 %v573, 112
        %v941 = vpop.permute.xlu0 %940
        %942 = vrot.lane.b32.xlu0 %v574, 112
        %v943 = vpop.permute.xlu0 %942
        %944 = vrot.lane.b32.xlu0 %v575, 112
        %v945 = vpop.permute.xlu0 %944
        %946 = vrot.lane.b32.xlu0 %v576, 112
        %v947 = vpop.permute.xlu0 %946
        %948 = vrot.lane.b32.xlu0 %v577, 112
        %v949 = vpop.permute.xlu0 %948
        %950 = vrot.lane.b32.xlu0 %v578, 112
        %v951 = vpop.permute.xlu0 %950
        %952 = vrot.lane.b32.xlu0 %v579, 112
        %v953 = vpop.permute.xlu0 %952
        %954 = vrot.lane.b32.xlu0 %v580, 112
        %v955 = vpop.permute.xlu0 %954
        %956 = vrot.lane.b32.xlu0 %v581, 112
        %v957 = vpop.permute.xlu0 %956
        %958 = vrot.lane.b32.xlu0 %v582, 112
        %v959 = vpop.permute.xlu0 %958
        %960 = vrot.lane.b32.xlu0 %v583, 112
        %v961 = vpop.permute.xlu0 %960
        %962 = vrot.lane.b32.xlu0 %v584, 112
        %v963 = vpop.permute.xlu0 %962
        %964 = vrot.lane.b32.xlu0 %v585, 112
        %v965 = vpop.permute.xlu0 %964
        %966 = vrot.lane.b32.xlu0 %v586, 112
        %v967 = vpop.permute.xlu0 %966
        %vm968 = vcmask 916480
        %v969 = vsel %vm968, %v921, %v923
        %v970 = vsel %vm968, %v923, %v925
        %v971 = vsel %vm968, %v927, %v929
        %v972 = vsel %vm968, %v929, %v931
        %v973 = vsel %vm968, %v933, %v935
        %v974 = vsel %vm968, %v935, %v937
        %v975 = vsel %vm968, %v939, %v941
        %v976 = vsel %vm968, %v941, %v943
        %v977 = vsel %vm968, %v945, %v947
        %v978 = vsel %vm968, %v947, %v949
        %v979 = vsel %vm968, %v951, %v953
        %v980 = vsel %vm968, %v953, %v955
        %v981 = vsel %vm968, %v957, %v959
        %v982 = vsel %vm968, %v959, %v961
        %v983 = vsel %vm968, %v963, %v965
        %v984 = vsel %vm968, %v965, %v967
        %1001 = vrot.lane.b32.xlu0 %v461, 111
        %v1002 = vpop.permute.xlu0 %1001
        %1003 = vrot.lane.b32.xlu0 %v462, 111
        %v1004 = vpop.permute.xlu0 %1003
        %1005 = vrot.lane.b32.xlu0 %v504, 111
        %v1006 = vpop.permute.xlu0 %1005
        %1007 = vrot.lane.b32.xlu0 %v463, 111
        %v1008 = vpop.permute.xlu0 %1007
        %1009 = vrot.lane.b32.xlu0 %v464, 111
        %v1010 = vpop.permute.xlu0 %1009
        %1011 = vrot.lane.b32.xlu0 %v505, 111
        %v1012 = vpop.permute.xlu0 %1011
        %1013 = vrot.lane.b32.xlu0 %v465, 111
        %v1014 = vpop.permute.xlu0 %1013
        %1015 = vrot.lane.b32.xlu0 %v466, 111
        %v1016 = vpop.permute.xlu0 %1015
        %1017 = vrot.lane.b32.xlu0 %v506, 111
        %v1018 = vpop.permute.xlu0 %1017
        %1019 = vrot.lane.b32.xlu0 %v467, 111
        %v1020 = vpop.permute.xlu0 %1019
        %1021 = vrot.lane.b32.xlu0 %v468, 111
        %v1022 = vpop.permute.xlu0 %1021
        %1023 = vrot.lane.b32.xlu0 %v507, 111
        %v1024 = vpop.permute.xlu0 %1023
        %1025 = vrot.lane.b32.xlu0 %v469, 111
        %v1026 = vpop.permute.xlu0 %1025
        %1027 = vrot.lane.b32.xlu0 %v470, 111
        %v1028 = vpop.permute.xlu0 %1027
        %1029 = vrot.lane.b32.xlu0 %v508, 111
        %v1030 = vpop.permute.xlu0 %1029
        %1031 = vrot.lane.b32.xlu0 %v471, 111
        %v1032 = vpop.permute.xlu0 %1031
        %1033 = vrot.lane.b32.xlu0 %v472, 111
        %v1034 = vpop.permute.xlu0 %1033
        %1035 = vrot.lane.b32.xlu0 %v509, 111
        %v1036 = vpop.permute.xlu0 %1035
        %1037 = vrot.lane.b32.xlu0 %v473, 111
        %v1038 = vpop.permute.xlu0 %1037
        %1039 = vrot.lane.b32.xlu0 %v474, 111
        %v1040 = vpop.permute.xlu0 %1039
        %1041 = vrot.lane.b32.xlu0 %v510, 111
        %v1042 = vpop.permute.xlu0 %1041
        %1043 = vrot.lane.b32.xlu0 %v475, 111
        %v1044 = vpop.permute.xlu0 %1043
        %1045 = vrot.lane.b32.xlu0 %v476, 111
        %v1046 = vpop.permute.xlu0 %1045
        %1047 = vrot.lane.b32.xlu0 %v511, 111
        %v1048 = vpop.permute.xlu0 %1047
        %vm1049 = vcmask 908288
        %v1050 = vsel %vm1049, %v1002, %v1004
        %v1051 = vsel %vm1049, %v1004, %v1006
        %v1052 = vsel %vm1049, %v1008, %v1010
        %v1053 = vsel %vm1049, %v1010, %v1012
        %v1054 = vsel %vm1049, %v1014, %v1016
        %v1055 = vsel %vm1049, %v1016, %v1018
        %v1056 = vsel %vm1049, %v1020, %v1022
        %v1057 = vsel %vm1049, %v1022, %v1024
        %v1058 = vsel %vm1049, %v1026, %v1028
        %v1059 = vsel %vm1049, %v1028, %v1030
        %v1060 = vsel %vm1049, %v1032, %v1034
        %v1061 = vsel %vm1049, %v1034, %v1036
        %v1062 = vsel %vm1049, %v1038, %v1040
        %v1063 = vsel %vm1049, %v1040, %v1042
        %v1064 = vsel %vm1049, %v1044, %v1046
        %v1065 = vsel %vm1049, %v1046, %v1048
        %1106 = vrot.lane.b32.xlu0 %v596, 110
        %v1107 = vpop.permute.xlu0 %1106
        %1108 = vrot.lane.b32.xlu0 %v597, 110
        %v1109 = vpop.permute.xlu0 %1108
        %1110 = vrot.lane.b32.xlu0 %v598, 110
        %v1111 = vpop.permute.xlu0 %1110
        %1112 = vrot.lane.b32.xlu0 %v599, 110
        %v1113 = vpop.permute.xlu0 %1112
        %1114 = vrot.lane.b32.xlu0 %v600, 110
        %v1115 = vpop.permute.xlu0 %1114
        %1116 = vrot.lane.b32.xlu0 %v601, 110
        %v1117 = vpop.permute.xlu0 %1116
        %1118 = vrot.lane.b32.xlu0 %v602, 110
        %v1119 = vpop.permute.xlu0 %1118
        %1120 = vrot.lane.b32.xlu0 %v603, 110
        %v1121 = vpop.permute.xlu0 %1120
        %1122 = vrot.lane.b32.xlu0 %v604, 110
        %v1123 = vpop.permute.xlu0 %1122
        %1124 = vrot.lane.b32.xlu0 %v605, 110
        %v1125 = vpop.permute.xlu0 %1124
        %1126 = vrot.lane.b32.xlu0 %v606, 110
        %v1127 = vpop.permute.xlu0 %1126
        %1128 = vrot.lane.b32.xlu0 %v607, 110
        %v1129 = vpop.permute.xlu0 %1128
        %1130 = vrot.lane.b32.xlu0 %v608, 110
        %v1131 = vpop.permute.xlu0 %1130
        %1132 = vrot.lane.b32.xlu0 %v609, 110
        %v1133 = vpop.permute.xlu0 %1132
        %1134 = vrot.lane.b32.xlu0 %v610, 110
        %v1135 = vpop.permute.xlu0 %1134
        %1136 = vrot.lane.b32.xlu0 %v611, 110
        %v1137 = vpop.permute.xlu0 %1136
        %1138 = vrot.lane.b32.xlu0 %v612, 110
        %v1139 = vpop.permute.xlu0 %1138
        %1140 = vrot.lane.b32.xlu0 %v613, 110
        %v1141 = vpop.permute.xlu0 %1140
        %1142 = vrot.lane.b32.xlu0 %v614, 110
        %v1143 = vpop.permute.xlu0 %1142
        %1144 = vrot.lane.b32.xlu0 %v615, 110
        %v1145 = vpop.permute.xlu0 %1144
        %1146 = vrot.lane.b32.xlu0 %v616, 110
        %v1147 = vpop.permute.xlu0 %1146
        %1148 = vrot.lane.b32.xlu0 %v617, 110
        %v1149 = vpop.permute.xlu0 %1148
        %1150 = vrot.lane.b32.xlu0 %v618, 110
        %v1151 = vpop.permute.xlu0 %1150
        %1152 = vrot.lane.b32.xlu0 %v619, 110
        %v1153 = vpop.permute.xlu0 %1152
        %vm1154 = vcmask 900096
        %v1155 = vsel %vm1154, %v1107, %v1109
        %v1156 = vsel %vm1154, %v1109, %v1111
        %v1157 = vsel %vm1154, %v1113, %v1115
        %v1158 = vsel %vm1154, %v1115, %v1117
        %v1159 = vsel %vm1154, %v1119, %v1121
        %v1160 = vsel %vm1154, %v1121, %v1123
        %v1161 = vsel %vm1154, %v1125, %v1127
        %v1162 = vsel %vm1154, %v1127, %v1129
        %v1163 = vsel %vm1154, %v1131, %v1133
        %v1164 = vsel %vm1154, %v1133, %v1135
        %v1165 = vsel %vm1154, %v1137, %v1139
        %v1166 = vsel %vm1154, %v1139, %v1141
        %v1167 = vsel %vm1154, %v1143, %v1145
        %v1168 = vsel %vm1154, %v1145, %v1147
        %v1169 = vsel %vm1154, %v1149, %v1151
        %v1170 = vsel %vm1154, %v1151, %v1153
        %1211 = vrot.lane.b32.xlu0 %v629, 96
        %v1212 = vpop.permute.xlu0 %1211
        %1213 = vrot.lane.b32.xlu0 %v630, 96
        %v1214 = vpop.permute.xlu0 %1213
        %1215 = vrot.lane.b32.xlu0 %v631, 96
        %v1216 = vpop.permute.xlu0 %1215
        %1217 = vrot.lane.b32.xlu0 %v632, 96
        %v1218 = vpop.permute.xlu0 %1217
        %1219 = vrot.lane.b32.xlu0 %v633, 96
        %v1220 = vpop.permute.xlu0 %1219
        %1221 = vrot.lane.b32.xlu0 %v634, 96
        %v1222 = vpop.permute.xlu0 %1221
        %1223 = vrot.lane.b32.xlu0 %v635, 96
        %v1224 = vpop.permute.xlu0 %1223
        %1225 = vrot.lane.b32.xlu0 %v636, 96
        %v1226 = vpop.permute.xlu0 %1225
        %1227 = vrot.lane.b32.xlu0 %v637, 96
        %v1228 = vpop.permute.xlu0 %1227
        %1229 = vrot.lane.b32.xlu0 %v638, 96
        %v1230 = vpop.permute.xlu0 %1229
        %1231 = vrot.lane.b32.xlu0 %v639, 96
        %v1232 = vpop.permute.xlu0 %1231
        %1233 = vrot.lane.b32.xlu0 %v640, 96
        %v1234 = vpop.permute.xlu0 %1233
        %1235 = vrot.lane.b32.xlu0 %v641, 96
        %v1236 = vpop.permute.xlu0 %1235
        %1237 = vrot.lane.b32.xlu0 %v642, 96
        %v1238 = vpop.permute.xlu0 %1237
        %1239 = vrot.lane.b32.xlu0 %v643, 96
        %v1240 = vpop.permute.xlu0 %1239
        %1241 = vrot.lane.b32.xlu0 %v644, 96
        %v1242 = vpop.permute.xlu0 %1241
        %1243 = vrot.lane.b32.xlu0 %v645, 96
        %v1244 = vpop.permute.xlu0 %1243
        %1245 = vrot.lane.b32.xlu0 %v646, 96
        %v1246 = vpop.permute.xlu0 %1245
        %1247 = vrot.lane.b32.xlu0 %v647, 96
        %v1248 = vpop.permute.xlu0 %1247
        %1249 = vrot.lane.b32.xlu0 %v648, 96
        %v1250 = vpop.permute.xlu0 %1249
        %1251 = vrot.lane.b32.xlu0 %v649, 96
        %v1252 = vpop.permute.xlu0 %1251
        %1253 = vrot.lane.b32.xlu0 %v650, 96
        %v1254 = vpop.permute.xlu0 %1253
        %1255 = vrot.lane.b32.xlu0 %v651, 96
        %v1256 = vpop.permute.xlu0 %1255
        %1257 = vrot.lane.b32.xlu0 %v652, 96
        %v1258 = vpop.permute.xlu0 %1257
        %vm1259 = vcmask 785408
        %v1260 = vsel %vm1259, %v1212, %v1214
        %v1261 = vsel %vm1259, %v1214, %v1216
        %v1262 = vsel %vm1259, %v1218, %v1220
        %v1263 = vsel %vm1259, %v1220, %v1222
        %v1264 = vsel %vm1259, %v1224, %v1226
        %v1265 = vsel %vm1259, %v1226, %v1228
        %v1266 = vsel %vm1259, %v1230, %v1232
        %v1267 = vsel %vm1259, %v1232, %v1234
        %v1268 = vsel %vm1259, %v1236, %v1238
        %v1269 = vsel %vm1259, %v1238, %v1240
        %v1270 = vsel %vm1259, %v1242, %v1244
        %v1271 = vsel %vm1259, %v1244, %v1246
        %v1272 = vsel %vm1259, %v1248, %v1250
        %v1273 = vsel %vm1259, %v1250, %v1252
        %v1274 = vsel %vm1259, %v1254, %v1256
        %v1275 = vsel %vm1259, %v1256, %v1258
        %1292 = vrot.lane.b32.xlu0 %v461, 95
        %v1293 = vpop.permute.xlu0 %1292
        %1294 = vrot.lane.b32.xlu0 %v462, 95
        %v1295 = vpop.permute.xlu0 %1294
        %1296 = vrot.lane.b32.xlu0 %v504, 95
        %v1297 = vpop.permute.xlu0 %1296
        %1298 = vrot.lane.b32.xlu0 %v463, 95
        %v1299 = vpop.permute.xlu0 %1298
        %1300 = vrot.lane.b32.xlu0 %v464, 95
        %v1301 = vpop.permute.xlu0 %1300
        %1302 = vrot.lane.b32.xlu0 %v505, 95
        %v1303 = vpop.permute.xlu0 %1302
        %1304 = vrot.lane.b32.xlu0 %v465, 95
        %v1305 = vpop.permute.xlu0 %1304
        %1306 = vrot.lane.b32.xlu0 %v466, 95
        %v1307 = vpop.permute.xlu0 %1306
        %1308 = vrot.lane.b32.xlu0 %v506, 95
        %v1309 = vpop.permute.xlu0 %1308
        %1310 = vrot.lane.b32.xlu0 %v467, 95
        %v1311 = vpop.permute.xlu0 %1310
        %1312 = vrot.lane.b32.xlu0 %v468, 95
        %v1313 = vpop.permute.xlu0 %1312
        %1314 = vrot.lane.b32.xlu0 %v507, 95
        %v1315 = vpop.permute.xlu0 %1314
        %1316 = vrot.lane.b32.xlu0 %v469, 95
        %v1317 = vpop.permute.xlu0 %1316
        %1318 = vrot.lane.b32.xlu0 %v470, 95
        %v1319 = vpop.permute.xlu0 %1318
        %1320 = vrot.lane.b32.xlu0 %v508, 95
        %v1321 = vpop.permute.xlu0 %1320
        %1322 = vrot.lane.b32.xlu0 %v471, 95
        %v1323 = vpop.permute.xlu0 %1322
        %1324 = vrot.lane.b32.xlu0 %v472, 95
        %v1325 = vpop.permute.xlu0 %1324
        %1326 = vrot.lane.b32.xlu0 %v509, 95
        %v1327 = vpop.permute.xlu0 %1326
        %1328 = vrot.lane.b32.xlu0 %v473, 95
        %v1329 = vpop.permute.xlu0 %1328
        %1330 = vrot.lane.b32.xlu0 %v474, 95
        %v1331 = vpop.permute.xlu0 %1330
        %1332 = vrot.lane.b32.xlu0 %v510, 95
        %v1333 = vpop.permute.xlu0 %1332
        %1334 = vrot.lane.b32.xlu0 %v475, 95
        %v1335 = vpop.permute.xlu0 %1334
        %1336 = vrot.lane.b32.xlu0 %v476, 95
        %v1337 = vpop.permute.xlu0 %1336
        %1338 = vrot.lane.b32.xlu0 %v511, 95
        %v1339 = vpop.permute.xlu0 %1338
        %vm1340 = vcmask 777216
        %v1341 = vsel %vm1340, %v1293, %v1295
        %v1342 = vsel %vm1340, %v1295, %v1297
        %v1343 = vsel %vm1340, %v1299, %v1301
        %v1344 = vsel %vm1340, %v1301, %v1303
        %v1345 = vsel %vm1340, %v1305, %v1307
        %v1346 = vsel %vm1340, %v1307, %v1309
        %v1347 = vsel %vm1340, %v1311, %v1313
        %v1348 = vsel %vm1340, %v1313, %v1315
        %v1349 = vsel %vm1340, %v1317, %v1319
        %v1350 = vsel %vm1340, %v1319, %v1321
        %v1351 = vsel %vm1340, %v1323, %v1325
        %v1352 = vsel %vm1340, %v1325, %v1327
        %v1353 = vsel %vm1340, %v1329, %v1331
        %v1354 = vsel %vm1340, %v1331, %v1333
        %v1355 = vsel %vm1340, %v1335, %v1337
        %v1356 = vsel %vm1340, %v1337, %v1339
        %1397 = vrot.lane.b32.xlu0 %v662, 94
        %v1398 = vpop.permute.xlu0 %1397
        %1399 = vrot.lane.b32.xlu0 %v663, 94
        %v1400 = vpop.permute.xlu0 %1399
        %1401 = vrot.lane.b32.xlu0 %v664, 94
        %v1402 = vpop.permute.xlu0 %1401
        %1403 = vrot.lane.b32.xlu0 %v665, 94
        %v1404 = vpop.permute.xlu0 %1403
        %1405 = vrot.lane.b32.xlu0 %v666, 94
        %v1406 = vpop.permute.xlu0 %1405
        %1407 = vrot.lane.b32.xlu0 %v667, 94
        %v1408 = vpop.permute.xlu0 %1407
        %1409 = vrot.lane.b32.xlu0 %v668, 94
        %v1410 = vpop.permute.xlu0 %1409
        %1411 = vrot.lane.b32.xlu0 %v669, 94
        %v1412 = vpop.permute.xlu0 %1411
        %1413 = vrot.lane.b32.xlu0 %v670, 94
        %v1414 = vpop.permute.xlu0 %1413
        %1415 = vrot.lane.b32.xlu0 %v671, 94
        %v1416 = vpop.permute.xlu0 %1415
        %1417 = vrot.lane.b32.xlu0 %v672, 94
        %v1418 = vpop.permute.xlu0 %1417
        %1419 = vrot.lane.b32.xlu0 %v673, 94
        %v1420 = vpop.permute.xlu0 %1419
        %1421 = vrot.lane.b32.xlu0 %v674, 94
        %v1422 = vpop.permute.xlu0 %1421
        %1423 = vrot.lane.b32.xlu0 %v675, 94
        %v1424 = vpop.permute.xlu0 %1423
        %1425 = vrot.lane.b32.xlu0 %v676, 94
        %v1426 = vpop.permute.xlu0 %1425
        %1427 = vrot.lane.b32.xlu0 %v677, 94
        %v1428 = vpop.permute.xlu0 %1427
        %1429 = vrot.lane.b32.xlu0 %v678, 94
        %v1430 = vpop.permute.xlu0 %1429
        %1431 = vrot.lane.b32.xlu0 %v679, 94
        %v1432 = vpop.permute.xlu0 %1431
        %1433 = vrot.lane.b32.xlu0 %v680, 94
        %v1434 = vpop.permute.xlu0 %1433
        %1435 = vrot.lane.b32.xlu0 %v681, 94
        %v1436 = vpop.permute.xlu0 %1435
        %1437 = vrot.lane.b32.xlu0 %v682, 94
        %v1438 = vpop.permute.xlu0 %1437
        %1439 = vrot.lane.b32.xlu0 %v683, 94
        %v1440 = vpop.permute.xlu0 %1439
        %1441 = vrot.lane.b32.xlu0 %v684, 94
        %v1442 = vpop.permute.xlu0 %1441
        %1443 = vrot.lane.b32.xlu0 %v685, 94
        %v1444 = vpop.permute.xlu0 %1443
        %vm1445 = vcmask 769024
        %v1446 = vsel %vm1445, %v1398, %v1400
        %v1447 = vsel %vm1445, %v1400, %v1402
        %v1448 = vsel %vm1445, %v1404, %v1406
        %v1449 = vsel %vm1445, %v1406, %v1408
        %v1450 = vsel %vm1445, %v1410, %v1412
        %v1451 = vsel %vm1445, %v1412, %v1414
        %v1452 = vsel %vm1445, %v1416, %v1418
        %v1453 = vsel %vm1445, %v1418, %v1420
        %v1454 = vsel %vm1445, %v1422, %v1424
        %v1455 = vsel %vm1445, %v1424, %v1426
        %v1456 = vsel %vm1445, %v1428, %v1430
        %v1457 = vsel %vm1445, %v1430, %v1432
        %v1458 = vsel %vm1445, %v1434, %v1436
        %v1459 = vsel %vm1445, %v1436, %v1438
        %v1460 = vsel %vm1445, %v1440, %v1442
        %v1461 = vsel %vm1445, %v1442, %v1444
        %1479 = vset.pattern.permute.xlu0 0
        %1480 = vperm.xlu0 %1479, %v334
        %v1481 = vpop.permute.xlu0 %1480
        %1484 = vset.pattern.permute.xlu0 0
        %1485 = vperm.xlu0 %1484, %v335
        %v1486 = vpop.permute.xlu0 %1485
        %1489 = vset.pattern.permute.xlu0 0
        %1490 = vperm.xlu0 %1489, %v336
        %v1491 = vpop.permute.xlu0 %1490
        %1494 = vset.pattern.permute.xlu0 0
        %1495 = vperm.xlu0 %1494, %v337
        %v1496 = vpop.permute.xlu0 %1495
        %vm1498 = vcmask 523264
        %v1500 = vsel %vm1498, %v318, 0
        %v1503 = vsel %vm1498, %v323, 0
        %v1506 = vsel %vm1498, %v328, 0
        %v1509 = vsel %vm1498, %v333, 0
        %1511 = vmatprep.subr.mxu0 %v489
        %1512 = vmatpush1.msra.mxu0 %v488
        %1513 = vmatprep.subr.mxu0 %v491
        %1514 = vmatpush1.msra.mxu0 %v490
        %1515 = vmatprep.subr.mxu0 %v493
        %1516 = vmatpush1.msra.mxu0 %v492
        %1517 = vmatprep.subr.mxu0 %v495
        %1518 = vmatpush1.msra.mxu0 %v494
        %1519 = vmatprep.subr.mxu0 %v497
        %1520 = vmatpush1.msra.mxu0 %v496
        %1521 = vmatprep.subr.mxu0 %v499
        %1522 = vmatpush1.msra.mxu0 %v498
        %1523 = vmatprep.subr.mxu0 %v501
        %1524 = vmatpush1.msra.mxu0 %v500
        %1525 = vmatprep.subr.mxu0 %v503
        %1526 = vmatpush1.msra.mxu0 %v502
        %1527 = vmatprep.subr.mxu0 %v760
        %1528 = vmatpush1.msra.mxu0 %v759
        %1529 = vmatprep.subr.mxu0 %v762
        %1530 = vmatpush1.msra.mxu0 %v761
        %1531 = vmatprep.subr.mxu0 %v764
        %1532 = vmatpush1.msra.mxu0 %v763
        %1533 = vmatprep.subr.mxu0 %v766
        %1534 = vmatpush1.msra.mxu0 %v765
        %1535 = vmatprep.subr.mxu0 %v768
        %1536 = vmatpush1.msra.mxu0 %v767
        %1537 = vmatprep.subr.mxu0 %v770
        %1538 = vmatpush1.msra.mxu0 %v769
        %1539 = vmatprep.subr.mxu0 %v772
        %1540 = vmatpush1.msra.mxu0 %v771
        %1541 = vmatprep.subr.mxu0 %v774
        %1542 = vmatpush1.msra.mxu0 %v773
        %1543 = vmatprep.subr.mxu0 %v865
        %1544 = vmatpush1.msra.mxu0 %v864
        %1545 = vmatprep.subr.mxu0 %v867
        %1546 = vmatpush1.msra.mxu0 %v866
        %1547 = vmatprep.subr.mxu0 %v869
        %1548 = vmatpush1.msra.mxu0 %v868
        %1549 = vmatprep.subr.mxu0 %v871
        %1550 = vmatpush1.msra.mxu0 %v870
        %1551 = vmatprep.subr.mxu0 %v873
        %1552 = vmatpush1.msra.mxu0 %v872
        %1553 = vmatprep.subr.mxu0 %v875
        %1554 = vmatpush1.msra.mxu0 %v874
        %1555 = vmatprep.subr.mxu0 %v877
        %1556 = vmatpush1.msra.mxu0 %v876
        %1557 = vmatprep.subr.mxu0 %v879
        %1558 = vmatpush1.msra.mxu0 %v878
        %1559 = vmatprep.subr.mxu0 %v970
        %1560 = vmatpush1.msra.mxu0 %v969
        %1561 = vmatprep.subr.mxu0 %v972
        %1562 = vmatpush1.msra.mxu0 %v971
        %1563 = vmatprep.subr.mxu0 %v974
        %1564 = vmatpush1.msra.mxu0 %v973
        %1565 = vmatprep.subr.mxu0 %v976
        %1566 = vmatpush1.msra.mxu0 %v975
        %1567 = vmatprep.subr.mxu0 %v978
        %1568 = vmatpush1.msra.mxu0 %v977
        %1569 = vmatprep.subr.mxu0 %v980
        %1570 = vmatpush1.msra.mxu0 %v979
        %1571 = vmatprep.subr.mxu0 %v982
        %1572 = vmatpush1.msra.mxu0 %v981
        %1573 = vmatprep.subr.mxu0 %v984
        %1574 = vmatpush1.msra.mxu0 %v983
        %1575 = vmatprep.mubr.f32.mxu0 %v315
        %1576 = vmatmul.mubr.f32.gmra.mrb[0].mxu0 %v314
        %v1577 = vpop.f32.mrb[0].mxu0
        %v1578 = vadd.f32 %v1481, %v1577
        %v1579 = vpop.f32.mrb[0].mxu0
        %v1580 = vadd.f32 %v1481, %v1579
        %1581 = vmatprep.mubr.f32.mxu0 %v320
        %1582 = vmatmul.mubr.f32.gmra.mrb[0].mxu0 %v319
        %v1583 = vpop.f32.mrb[0].mxu0
        %v1584 = vadd.f32 %v1486, %v1583
        %v1585 = vpop.f32.mrb[0].mxu0
        %v1586 = vadd.f32 %v1486, %v1585
        %1587 = vmatprep.mubr.f32.mxu0 %v325
        %1588 = vmatmul.mubr.f32.gmra.mrb[0].mxu0 %v324
        %v1589 = vpop.f32.mrb[0].mxu0
        %v1590 = vadd.f32 %v1491, %v1589
        %v1591 = vpop.f32.mrb[0].mxu0
        %v1592 = vadd.f32 %v1491, %v1591
        %1593 = vmatprep.mubr.f32.mxu0 %v330
        %1594 = vmatmul.mubr.f32.gmra.mrb[0].mxu0 %v329
        %v1595 = vpop.f32.mrb[0].mxu0
        %v1596 = vadd.f32 %v1496, %v1595
        %v1597 = vpop.f32.mrb[0].mxu0
        %v1598 = vadd.f32 %v1496, %v1597
        %1599 = vdwg.mxu0
        %1600 = vmatprep.subr.mxu0 %v1051
        %1601 = vmatpush1.msra.mxu0 %v1050
        %1602 = vmatprep.subr.mxu0 %v1053
        %1603 = vmatpush1.msra.mxu0 %v1052
        %1604 = vmatprep.subr.mxu0 %v1055
        %1605 = vmatpush1.msra.mxu0 %v1054
        %1606 = vmatprep.subr.mxu0 %v1057
        %1607 = vmatpush1.msra.mxu0 %v1056
        %1608 = vmatprep.subr.mxu0 %v1059
        %1609 = vmatpush1.msra.mxu0 %v1058
        %1610 = vmatprep.subr.mxu0 %v1061
        %1611 = vmatpush1.msra.mxu0 %v1060
        %1612 = vmatprep.subr.mxu0 %v1063
        %1613 = vmatpush1.msra.mxu0 %v1062
        %1614 = vmatprep.subr.mxu0 %v1065
        %1615 = vmatpush1.msra.mxu0 %v1064
        %1616 = vmatprep.subr.mxu0 %v1156
        %1617 = vmatpush1.msra.mxu0 %v1155
        %1618 = vmatprep.subr.mxu0 %v1158
        %1619 = vmatpush1.msra.mxu0 %v1157
        %1620 = vmatprep.subr.mxu0 %v1160
        %1621 = vmatpush1.msra.mxu0 %v1159
        %1622 = vmatprep.subr.mxu0 %v1162
        %1623 = vmatpush1.msra.mxu0 %v1161
        %1624 = vmatprep.subr.mxu0 %v1164
        %1625 = vmatpush1.msra.mxu0 %v1163
        %1626 = vmatprep.subr.mxu0 %v1166
        %1627 = vmatpush1.msra.mxu0 %v1165
        %1628 = vmatprep.subr.mxu0 %v1168
        %1629 = vmatpush1.msra.mxu0 %v1167
        %1630 = vmatprep.subr.mxu0 %v1170
        %1631 = vmatpush1.msra.mxu0 %v1169
        %1632 = vmatprep.subr.mxu0 %v1261
        %1633 = vmatpush1.msra.mxu0 %v1260
        %1634 = vmatprep.subr.mxu0 %v1263
        %1635 = vmatpush1.msra.mxu0 %v1262
        %1636 = vmatprep.subr.mxu0 %v1265
        %1637 = vmatpush1.msra.mxu0 %v1264
        %1638 = vmatprep.subr.mxu0 %v1267
        %1639 = vmatpush1.msra.mxu0 %v1266
        %1640 = vmatprep.subr.mxu0 %v1269
        %1641 = vmatpush1.msra.mxu0 %v1268
        %1642 = vmatprep.subr.mxu0 %v1271
        %1643 = vmatpush1.msra.mxu0 %v1270
        %1644 = vmatprep.subr.mxu0 %v1273
        %1645 = vmatpush1.msra.mxu0 %v1272
        %1646 = vmatprep.subr.mxu0 %v1275
        %1647 = vmatpush1.msra.mxu0 %v1274
        %1648 = vmatprep.subr.mxu0 %v1342
        %1649 = vmatpush1.msra.mxu0 %v1341
        %1650 = vmatprep.subr.mxu0 %v1344
        %1651 = vmatpush1.msra.mxu0 %v1343
        %1652 = vmatprep.subr.mxu0 %v1346
        %1653 = vmatpush1.msra.mxu0 %v1345
        %1654 = vmatprep.subr.mxu0 %v1348
        %1655 = vmatpush1.msra.mxu0 %v1347
        %1656 = vmatprep.subr.mxu0 %v1350
        %1657 = vmatpush1.msra.mxu0 %v1349
        %1658 = vmatprep.subr.mxu0 %v1352
        %1659 = vmatpush1.msra.mxu0 %v1351
        %1660 = vmatprep.subr.mxu0 %v1354
        %1661 = vmatpush1.msra.mxu0 %v1353
        %1662 = vmatprep.subr.mxu0 %v1356
        %1663 = vmatpush1.msra.mxu0 %v1355
        %1664 = vmatprep.mubr.f32.mxu0 %v317
        %1665 = vmatmul.mubr.f32.gmra.mrb[0].mxu0 %v316
        %v1666 = vpop.f32.mrb[0].mxu0
        %v1667 = vadd.f32 %v1578, %v1666
        %v1668 = vpop.f32.mrb[0].mxu0
        %v1669 = vadd.f32 %v1580, %v1668
        %1670 = vmatprep.mubr.f32.mxu0 %v322
        %1671 = vmatmul.mubr.f32.gmra.mrb[0].mxu0 %v321
        %v1672 = vpop.f32.mrb[0].mxu0
        %v1673 = vadd.f32 %v1584, %v1672
        %v1674 = vpop.f32.mrb[0].mxu0
        %v1675 = vadd.f32 %v1586, %v1674
        %1676 = vmatprep.mubr.f32.mxu0 %v327
        %1677 = vmatmul.mubr.f32.gmra.mrb[0].mxu0 %v326
        %v1678 = vpop.f32.mrb[0].mxu0
        %v1679 = vadd.f32 %v1590, %v1678
        %v1680 = vpop.f32.mrb[0].mxu0
        %v1681 = vadd.f32 %v1592, %v1680
        %1682 = vmatprep.mubr.f32.mxu0 %v332
        %1683 = vmatmul.mubr.f32.gmra.mrb[0].mxu0 %v331
        %v1684 = vpop.f32.mrb[0].mxu0
        %v1685 = vadd.f32 %v1596, %v1684
        %v1686 = vpop.f32.mrb[0].mxu0
        %v1687 = vadd.f32 %v1598, %v1686
        %1688 = vdwg.mxu0
        %1689 = vmatprep.subr.mxu0 %v1447
        %1690 = vmatpush1.msra.mxu0 %v1446
        %1691 = vmatprep.subr.mxu0 %v1449
        %1692 = vmatpush1.msra.mxu0 %v1448
        %1693 = vmatprep.subr.mxu0 %v1451
        %1694 = vmatpush1.msra.mxu0 %v1450
        %1695 = vmatprep.subr.mxu0 %v1453
        %1696 = vmatpush1.msra.mxu0 %v1452
        %1697 = vmatprep.subr.mxu0 %v1455
        %1698 = vmatpush1.msra.mxu0 %v1454
        %1699 = vmatprep.subr.mxu0 %v1457
        %1700 = vmatpush1.msra.mxu0 %v1456
        %1701 = vmatprep.subr.mxu0 %v1459
        %1702 = vmatpush1.msra.mxu0 %v1458
        %1703 = vmatprep.subr.mxu0 %v1461
        %1704 = vmatpush1.msra.mxu0 %v1460
        %1705 = vmatprep.subr.mxu0 0.0
        %1706 = vmatpush1.msra.mxu0 0.0
        %1707 = vmatprep.subr.mxu0 0.0
        %1708 = vmatpush1.msra.mxu0 0.0
        %1709 = vmatprep.subr.mxu0 0.0
        %1710 = vmatpush1.msra.mxu0 0.0
        %1711 = vmatprep.subr.mxu0 0.0
        %1712 = vmatpush1.msra.mxu0 0.0
        %1713 = vmatprep.subr.mxu0 0.0
        %1714 = vmatpush1.msra.mxu0 0.0
        %1715 = vmatprep.subr.mxu0 0.0
        %1716 = vmatpush1.msra.mxu0 0.0
        %1717 = vmatprep.subr.mxu0 0.0
        %1718 = vmatpush1.msra.mxu0 0.0
        %1719 = vmatprep.subr.mxu0 0.0
        %1720 = vmatpush1.msra.mxu0 0.0
        %1721 = vmatprep.subr.mxu0 0.0
        %1722 = vmatpush1.msra.mxu0 0.0
        %1723 = vmatprep.subr.mxu0 0.0
        %1724 = vmatpush1.msra.mxu0 0.0
        %1725 = vmatprep.subr.mxu0 0.0
        %1726 = vmatpush1.msra.mxu0 0.0
        %1727 = vmatprep.subr.mxu0 0.0
        %1728 = vmatpush1.msra.mxu0 0.0
        %1729 = vmatprep.subr.mxu0 0.0
        %1730 = vmatpush1.msra.mxu0 0.0
        %1731 = vmatprep.subr.mxu0 0.0
        %1732 = vmatpush1.msra.mxu0 0.0
        %1733 = vmatprep.subr.mxu0 0.0
        %1734 = vmatpush1.msra.mxu0 0.0
        %1735 = vmatprep.subr.mxu0 0.0
        %1736 = vmatpush1.msra.mxu0 0.0
        %1737 = vmatprep.subr.mxu0 0.0
        %1738 = vmatpush1.msra.mxu0 0.0
        %1739 = vmatprep.subr.mxu0 0.0
        %1740 = vmatpush1.msra.mxu0 0.0
        %1741 = vmatprep.subr.mxu0 0.0
        %1742 = vmatpush1.msra.mxu0 0.0
        %1743 = vmatprep.subr.mxu0 0.0
        %1744 = vmatpush1.msra.mxu0 0.0
        %1745 = vmatprep.subr.mxu0 0.0
        %1746 = vmatpush1.msra.mxu0 0.0
        %1747 = vmatprep.subr.mxu0 0.0
        %1748 = vmatpush1.msra.mxu0 0.0
        %1749 = vmatprep.subr.mxu0 0.0
        %1750 = vmatpush1.msra.mxu0 0.0
        %1751 = vmatprep.subr.mxu0 0.0
        %1752 = vmatpush1.msra.mxu0 0.0
        %1753 = vmatprep.mubr.f32.mxu0 0.0
        %1754 = vmatmul.mubr.f32.gmra.mrb[0].mxu0 %v1500
        %v1755 = vpop.f32.mrb[0].mxu0
        %v1756 = vadd.f32 %v1667, %v1755
        %v1757 = vpop.f32.mrb[0].mxu0
        %v1758 = vadd.f32 %v1669, %v1757
        %1759 = vmatprep.mubr.f32.mxu0 0.0
        %1760 = vmatmul.mubr.f32.gmra.mrb[0].mxu0 %v1503
        %v1761 = vpop.f32.mrb[0].mxu0
        %v1762 = vadd.f32 %v1673, %v1761
        %v1763 = vpop.f32.mrb[0].mxu0
        %v1764 = vadd.f32 %v1675, %v1763
        %1765 = vmatprep.mubr.f32.mxu0 0.0
        %1766 = vmatmul.mubr.f32.gmra.mrb[0].mxu0 %v1506
        %v1767 = vpop.f32.mrb[0].mxu0
        %v1768 = vadd.f32 %v1679, %v1767
        %v1769 = vpop.f32.mrb[0].mxu0
        %v1770 = vadd.f32 %v1681, %v1769
        %1771 = vmatprep.mubr.f32.mxu0 0.0
        %1772 = vmatmul.mubr.f32.gmra.mrb[0].mxu0 %v1509
        %v1773 = vpop.f32.mrb[0].mxu0
        %v1774 = vadd.f32 %v1685, %v1773
        %v1775 = vpop.f32.mrb[0].mxu0
        %v1776 = vadd.f32 %v1687, %v1775
        %1777 = vdwg.mxu0
        %v1778 = vmax.f32 %v1756, 0.0
        %v1779 = vmax.f32 %v1758, 0.0
        %v1780 = vmax.f32 %v1762, 0.0
        %v1781 = vmax.f32 %v1764, 0.0
        %v1782 = vmax.f32 %v1768, 0.0
        %v1783 = vmax.f32 %v1770, 0.0
        %v1784 = vmax.f32 %v1774, 0.0
        %v1785 = vmax.f32 %v1776, 0.0
        %1794 = vrot.lane.b32.xlu0 %v1778, 17
        %v1795 = vpop.permute.xlu0 %1794
        %1796 = vrot.lane.b32.xlu0 %v1779, 17
        %v1797 = vpop.permute.xlu0 %1796
        %1798 = vrot.lane.b32.xlu0 %v1780, 17
        %v1799 = vpop.permute.xlu0 %1798
        %1800 = vrot.lane.b32.xlu0 %v1781, 17
        %v1801 = vpop.permute.xlu0 %1800
        %1802 = vrot.lane.b32.xlu0 %v1782, 17
        %v1803 = vpop.permute.xlu0 %1802
        %1804 = vrot.lane.b32.xlu0 %v1783, 17
        %v1805 = vpop.permute.xlu0 %1804
        %1806 = vrot.lane.b32.xlu0 %v1784, 17
        %v1807 = vpop.permute.xlu0 %1806
        %1808 = vrot.lane.b32.xlu0 %v1785, 17
        %v1809 = vpop.permute.xlu0 %1808
        %v1810 = vsel %vm285, %v1795, %v1797
        %v1811 = vsel %vm285, %v1799, %v1801
        %v1812 = vsel %vm285, %v1803, %v1805
        %v1813 = vsel %vm285, %v1807, %v1809
        %1826 = vst.msk [vmem:[#allocation3] sm:$0xff] %vm436, %v1795
        %1827 = vst [vmem:[#allocation3 + $0x8] sm:$0xff] %v1810
        %1828 = vst.msk [vmem:[#allocation3 + $0x10] sm:$0xff] %vm285, %v1797
        %1829 = vst.msk [vmem:[#allocation3 + $0x18] sm:$0xff] %vm436, %v1799
        %1830 = vst [vmem:[#allocation3 + $0x20] sm:$0xff] %v1811
        %1831 = vst.msk [vmem:[#allocation3 + $0x28] sm:$0xff] %vm285, %v1801
        %1832 = vst.msk [vmem:[#allocation3 + $0x30] sm:$0xff] %vm436, %v1803
        %1833 = vst [vmem:[#allocation3 + $0x38] sm:$0xff] %v1812
        %1834 = vst.msk [vmem:[#allocation3 + $0x40] sm:$0xff] %vm285, %v1805
        %1835 = vst.msk [vmem:[#allocation3 + $0x48] sm:$0xff] %vm436, %v1807
        %1836 = vst [vmem:[#allocation3 + $0x50] sm:$0xff] %v1813
        %1837 = vst.msk [vmem:[#allocation3 + $0x58] sm:$0xff] %vm285, %v1809
        %v1838 = vld [vmem:[#allocation3] sm:$0xff]
        %v1839 = vld [vmem:[#allocation3 + $0x8] sm:$0xff]
        %v1840 = vld [vmem:[#allocation3 + $0x18] sm:$0xff]
        %v1841 = vld [vmem:[#allocation3 + $0x20] sm:$0xff]
        %v1842 = vld [vmem:[#allocation3 + $0x30] sm:$0xff]
        %v1843 = vld [vmem:[#allocation3 + $0x38] sm:$0xff]
        %v1844 = vld [vmem:[#allocation3 + $0x48] sm:$0xff]
        %v1845 = vld [vmem:[#allocation3 + $0x50] sm:$0xff]
        %v1846 = vmul.f32 %v1838, %v481
        %v1847 = vmul.f32 %v1839, %v485
        %v1848 = vmul.f32 %v1840, %v481
        %v1849 = vmul.f32 %v1841, %v485
        %v1850 = vmul.f32 %v1842, %v481
        %v1851 = vmul.f32 %v1843, %v485
        %v1852 = vmul.f32 %v1844, %v481
        %v1853 = vmul.f32 %v1845, %v485
        %v1854 = vld [vmem:[#allocation3 + $0x10] sm:$0xff]
        %v1855 = vld [vmem:[#allocation3 + $0x28] sm:$0xff]
        %v1856 = vld [vmem:[#allocation3 + $0x40] sm:$0xff]
        %v1857 = vld [vmem:[#allocation3 + $0x58] sm:$0xff]
        %v1858 = vmul.f32 %v1838, %v522
        %v1859 = vmul.f32 %v1839, %v526
        %v1860 = vmul.f32 %v1854, %v524
        %v1861 = vmul.f32 %v1840, %v522
        %v1862 = vmul.f32 %v1841, %v526
        %v1863 = vmul.f32 %v1855, %v524
        %v1864 = vmul.f32 %v1842, %v522
        %v1865 = vmul.f32 %v1843, %v526
        %v1866 = vmul.f32 %v1856, %v524
        %v1867 = vmul.f32 %v1844, %v522
        %v1868 = vmul.f32 %v1845, %v526
        %v1869 = vmul.f32 %v1857, %v524
        %v1870 = vmul.f32 %v1838, %v555
        %v1871 = vmul.f32 %v1839, %v559
        %v1872 = vmul.f32 %v1854, %v557
        %v1873 = vmul.f32 %v1840, %v555
        %v1874 = vmul.f32 %v1841, %v559
        %v1875 = vmul.f32 %v1855, %v557
        %v1876 = vmul.f32 %v1842, %v555
        %v1877 = vmul.f32 %v1843, %v559
        %v1878 = vmul.f32 %v1856, %v557
        %v1879 = vmul.f32 %v1844, %v555
        %v1880 = vmul.f32 %v1845, %v559
        %v1881 = vmul.f32 %v1857, %v557
        %v1882 = vmul.f32 %v1838, %v588
        %v1883 = vmul.f32 %v1839, %v592
        %v1884 = vmul.f32 %v1854, %v590
        %v1885 = vmul.f32 %v1840, %v588
        %v1886 = vmul.f32 %v1841, %v592
        %v1887 = vmul.f32 %v1855, %v590
        %v1888 = vmul.f32 %v1842, %v588
        %v1889 = vmul.f32 %v1843, %v592
        %v1890 = vmul.f32 %v1856, %v590
        %v1891 = vmul.f32 %v1844, %v588
        %v1892 = vmul.f32 %v1845, %v592
        %v1893 = vmul.f32 %v1857, %v590
        %v1894 = vmul.f32 %v1838, %v621
        %v1895 = vmul.f32 %v1839, %v625
        %v1896 = vmul.f32 %v1854, %v623
        %v1897 = vmul.f32 %v1840, %v621
        %v1898 = vmul.f32 %v1841, %v625
        %v1899 = vmul.f32 %v1855, %v623
        %v1900 = vmul.f32 %v1842, %v621
        %v1901 = vmul.f32 %v1843, %v625
        %v1902 = vmul.f32 %v1856, %v623
        %v1903 = vmul.f32 %v1844, %v621
        %v1904 = vmul.f32 %v1845, %v625
        %v1905 = vmul.f32 %v1857, %v623
        %v1906 = vmul.f32 %v1838, %v654
        %v1907 = vmul.f32 %v1839, %v658
        %v1908 = vmul.f32 %v1854, %v656
        %v1909 = vmul.f32 %v1840, %v654
        %v1910 = vmul.f32 %v1841, %v658
        %v1911 = vmul.f32 %v1855, %v656
        %v1912 = vmul.f32 %v1842, %v654
        %v1913 = vmul.f32 %v1843, %v658
        %v1914 = vmul.f32 %v1856, %v656
        %v1915 = vmul.f32 %v1844, %v654
        %v1916 = vmul.f32 %v1845, %v658
        %v1917 = vmul.f32 %v1857, %v656
        %1930 = vrot.lane.b32.xlu0 %v1838, 127
        %v1931 = vpop.permute.xlu0 %1930
        %1932 = vrot.lane.b32.xlu0 %v1839, 127
        %v1933 = vpop.permute.xlu0 %1932
        %1934 = vrot.lane.b32.xlu0 %v1854, 127
        %v1935 = vpop.permute.xlu0 %1934
        %1936 = vrot.lane.b32.xlu0 %v1840, 127
        %v1937 = vpop.permute.xlu0 %1936
        %1938 = vrot.lane.b32.xlu0 %v1841, 127
        %v1939 = vpop.permute.xlu0 %1938
        %1940 = vrot.lane.b32.xlu0 %v1855, 127
        %v1941 = vpop.permute.xlu0 %1940
        %1942 = vrot.lane.b32.xlu0 %v1842, 127
        %v1943 = vpop.permute.xlu0 %1942
        %1944 = vrot.lane.b32.xlu0 %v1843, 127
        %v1945 = vpop.permute.xlu0 %1944
        %1946 = vrot.lane.b32.xlu0 %v1856, 127
        %v1947 = vpop.permute.xlu0 %1946
        %1948 = vrot.lane.b32.xlu0 %v1844, 127
        %v1949 = vpop.permute.xlu0 %1948
        %1950 = vrot.lane.b32.xlu0 %v1845, 127
        %v1951 = vpop.permute.xlu0 %1950
        %1952 = vrot.lane.b32.xlu0 %v1857, 127
        %v1953 = vpop.permute.xlu0 %1952
        %v1954 = vsel %vm758, %v1931, %v1933
        %v1955 = vsel %vm758, %v1933, %v1935
        %v1956 = vsel %vm758, %v1937, %v1939
        %v1957 = vsel %vm758, %v1939, %v1941
        %v1958 = vsel %vm758, %v1943, %v1945
        %v1959 = vsel %vm758, %v1945, %v1947
        %v1960 = vsel %vm758, %v1949, %v1951
        %v1961 = vsel %vm758, %v1951, %v1953
        %1982 = vrot.lane.b32.xlu0 %v1858, 126
        %v1983 = vpop.permute.xlu0 %1982
        %1984 = vrot.lane.b32.xlu0 %v1859, 126
        %v1985 = vpop.permute.xlu0 %1984
        %1986 = vrot.lane.b32.xlu0 %v1860, 126
        %v1987 = vpop.permute.xlu0 %1986
        %1988 = vrot.lane.b32.xlu0 %v1861, 126
        %v1989 = vpop.permute.xlu0 %1988
        %1990 = vrot.lane.b32.xlu0 %v1862, 126
        %v1991 = vpop.permute.xlu0 %1990
        %1992 = vrot.lane.b32.xlu0 %v1863, 126
        %v1993 = vpop.permute.xlu0 %1992
        %1994 = vrot.lane.b32.xlu0 %v1864, 126
        %v1995 = vpop.permute.xlu0 %1994
        %1996 = vrot.lane.b32.xlu0 %v1865, 126
        %v1997 = vpop.permute.xlu0 %1996
        %1998 = vrot.lane.b32.xlu0 %v1866, 126
        %v1999 = vpop.permute.xlu0 %1998
        %2000 = vrot.lane.b32.xlu0 %v1867, 126
        %v2001 = vpop.permute.xlu0 %2000
        %2002 = vrot.lane.b32.xlu0 %v1868, 126
        %v2003 = vpop.permute.xlu0 %2002
        %2004 = vrot.lane.b32.xlu0 %v1869, 126
        %v2005 = vpop.permute.xlu0 %2004
        %v2006 = vsel %vm863, %v1983, %v1985
        %v2007 = vsel %vm863, %v1985, %v1987
        %v2008 = vsel %vm863, %v1989, %v1991
        %v2009 = vsel %vm863, %v1991, %v1993
        %v2010 = vsel %vm863, %v1995, %v1997
        %v2011 = vsel %vm863, %v1997, %v1999
        %v2012 = vsel %vm863, %v2001, %v2003
        %v2013 = vsel %vm863, %v2003, %v2005
        %2034 = vrot.lane.b32.xlu0 %v1870, 112
        %v2035 = vpop.permute.xlu0 %2034
        %2036 = vrot.lane.b32.xlu0 %v1871, 112
        %v2037 = vpop.permute.xlu0 %2036
        %2038 = vrot.lane.b32.xlu0 %v1872, 112
        %v2039 = vpop.permute.xlu0 %2038
        %2040 = vrot.lane.b32.xlu0 %v1873, 112
        %v2041 = vpop.permute.xlu0 %2040
        %2042 = vrot.lane.b32.xlu0 %v1874, 112
        %v2043 = vpop.permute.xlu0 %2042
        %2044 = vrot.lane.b32.xlu0 %v1875, 112
        %v2045 = vpop.permute.xlu0 %2044
        %2046 = vrot.lane.b32.xlu0 %v1876, 112
        %v2047 = vpop.permute.xlu0 %2046
        %2048 = vrot.lane.b32.xlu0 %v1877, 112
        %v2049 = vpop.permute.xlu0 %2048
        %2050 = vrot.lane.b32.xlu0 %v1878, 112
        %v2051 = vpop.permute.xlu0 %2050
        %2052 = vrot.lane.b32.xlu0 %v1879, 112
        %v2053 = vpop.permute.xlu0 %2052
        %2054 = vrot.lane.b32.xlu0 %v1880, 112
        %v2055 = vpop.permute.xlu0 %2054
        %2056 = vrot.lane.b32.xlu0 %v1881, 112
        %v2057 = vpop.permute.xlu0 %2056
        %v2058 = vsel %vm968, %v2035, %v2037
        %v2059 = vsel %vm968, %v2037, %v2039
        %v2060 = vsel %vm968, %v2041, %v2043
        %v2061 = vsel %vm968, %v2043, %v2045
        %v2062 = vsel %vm968, %v2047, %v2049
        %v2063 = vsel %vm968, %v2049, %v2051
        %v2064 = vsel %vm968, %v2053, %v2055
        %v2065 = vsel %vm968, %v2055, %v2057
        %2074 = vrot.lane.b32.xlu0 %v1838, 111
        %v2075 = vpop.permute.xlu0 %2074
        %2076 = vrot.lane.b32.xlu0 %v1839, 111
        %v2077 = vpop.permute.xlu0 %2076
        %2078 = vrot.lane.b32.xlu0 %v1854, 111
        %v2079 = vpop.permute.xlu0 %2078
        %2080 = vrot.lane.b32.xlu0 %v1840, 111
        %v2081 = vpop.permute.xlu0 %2080
        %2082 = vrot.lane.b32.xlu0 %v1841, 111
        %v2083 = vpop.permute.xlu0 %2082
        %2084 = vrot.lane.b32.xlu0 %v1855, 111
        %v2085 = vpop.permute.xlu0 %2084
        %2086 = vrot.lane.b32.xlu0 %v1842, 111
        %v2087 = vpop.permute.xlu0 %2086
        %2088 = vrot.lane.b32.xlu0 %v1843, 111
        %v2089 = vpop.permute.xlu0 %2088
        %2090 = vrot.lane.b32.xlu0 %v1856, 111
        %v2091 = vpop.permute.xlu0 %2090
        %2092 = vrot.lane.b32.xlu0 %v1844, 111
        %v2093 = vpop.permute.xlu0 %2092
        %2094 = vrot.lane.b32.xlu0 %v1845, 111
        %v2095 = vpop.permute.xlu0 %2094
        %2096 = vrot.lane.b32.xlu0 %v1857, 111
        %v2097 = vpop.permute.xlu0 %2096
        %v2098 = vsel %vm1049, %v2075, %v2077
        %v2099 = vsel %vm1049, %v2077, %v2079
        %v2100 = vsel %vm1049, %v2081, %v2083
        %v2101 = vsel %vm1049, %v2083, %v2085
        %v2102 = vsel %vm1049, %v2087, %v2089
        %v2103 = vsel %vm1049, %v2089, %v2091
        %v2104 = vsel %vm1049, %v2093, %v2095
        %v2105 = vsel %vm1049, %v2095, %v2097
        %2126 = vrot.lane.b32.xlu0 %v1882, 110
        %v2127 = vpop.permute.xlu0 %2126
        %2128 = vrot.lane.b32.xlu0 %v1883, 110
        %v2129 = vpop.permute.xlu0 %2128
        %2130 = vrot.lane.b32.xlu0 %v1884, 110
        %v2131 = vpop.permute.xlu0 %2130
        %2132 = vrot.lane.b32.xlu0 %v1885, 110
        %v2133 = vpop.permute.xlu0 %2132
        %2134 = vrot.lane.b32.xlu0 %v1886, 110
        %v2135 = vpop.permute.xlu0 %2134
        %2136 = vrot.lane.b32.xlu0 %v1887, 110
        %v2137 = vpop.permute.xlu0 %2136
        %2138 = vrot.lane.b32.xlu0 %v1888, 110
        %v2139 = vpop.permute.xlu0 %2138
        %2140 = vrot.lane.b32.xlu0 %v1889, 110
        %v2141 = vpop.permute.xlu0 %2140
        %2142 = vrot.lane.b32.xlu0 %v1890, 110
        %v2143 = vpop.permute.xlu0 %2142
        %2144 = vrot.lane.b32.xlu0 %v1891, 110
        %v2145 = vpop.permute.xlu0 %2144
        %2146 = vrot.lane.b32.xlu0 %v1892, 110
        %v2147 = vpop.permute.xlu0 %2146
        %2148 = vrot.lane.b32.xlu0 %v1893, 110
        %v2149 = vpop.permute.xlu0 %2148
        %v2150 = vsel %vm1154, %v2127, %v2129
        %v2151 = vsel %vm1154, %v2129, %v2131
        %v2152 = vsel %vm1154, %v2133, %v2135
        %v2153 = vsel %vm1154, %v2135, %v2137
        %v2154 = vsel %vm1154, %v2139, %v2141
        %v2155 = vsel %vm1154, %v2141, %v2143
        %v2156 = vsel %vm1154, %v2145, %v2147
        %v2157 = vsel %vm1154, %v2147, %v2149
        %2178 = vrot.lane.b32.xlu0 %v1894, 96
        %v2179 = vpop.permute.xlu0 %2178
        %2180 = vrot.lane.b32.xlu0 %v1895, 96
        %v2181 = vpop.permute.xlu0 %2180
        %2182 = vrot.lane.b32.xlu0 %v1896, 96
        %v2183 = vpop.permute.xlu0 %2182
        %2184 = vrot.lane.b32.xlu0 %v1897, 96
        %v2185 = vpop.permute.xlu0 %2184
        %2186 = vrot.lane.b32.xlu0 %v1898, 96
        %v2187 = vpop.permute.xlu0 %2186
        %2188 = vrot.lane.b32.xlu0 %v1899, 96
        %v2189 = vpop.permute.xlu0 %2188
        %2190 = vrot.lane.b32.xlu0 %v1900, 96
        %v2191 = vpop.permute.xlu0 %2190
        %2192 = vrot.lane.b32.xlu0 %v1901, 96
        %v2193 = vpop.permute.xlu0 %2192
        %2194 = vrot.lane.b32.xlu0 %v1902, 96
        %v2195 = vpop.permute.xlu0 %2194
        %2196 = vrot.lane.b32.xlu0 %v1903, 96
        %v2197 = vpop.permute.xlu0 %2196
        %2198 = vrot.lane.b32.xlu0 %v1904, 96
        %v2199 = vpop.permute.xlu0 %2198
        %2200 = vrot.lane.b32.xlu0 %v1905, 96
        %v2201 = vpop.permute.xlu0 %2200
        %v2202 = vsel %vm1259, %v2179, %v2181
        %v2203 = vsel %vm1259, %v2181, %v2183
        %v2204 = vsel %vm1259, %v2185, %v2187
        %v2205 = vsel %vm1259, %v2187, %v2189
        %v2206 = vsel %vm1259, %v2191, %v2193
        %v2207 = vsel %vm1259, %v2193, %v2195
        %v2208 = vsel %vm1259, %v2197, %v2199
        %v2209 = vsel %vm1259, %v2199, %v2201
        %2218 = vrot.lane.b32.xlu0 %v1838, 95
        %v2219 = vpop.permute.xlu0 %2218
        %2220 = vrot.lane.b32.xlu0 %v1839, 95
        %v2221 = vpop.permute.xlu0 %2220
        %2222 = vrot.lane.b32.xlu0 %v1854, 95
        %v2223 = vpop.permute.xlu0 %2222
        %2224 = vrot.lane.b32.xlu0 %v1840, 95
        %v2225 = vpop.permute.xlu0 %2224
        %2226 = vrot.lane.b32.xlu0 %v1841, 95
        %v2227 = vpop.permute.xlu0 %2226
        %2228 = vrot.lane.b32.xlu0 %v1855, 95
        %v2229 = vpop.permute.xlu0 %2228
        %2230 = vrot.lane.b32.xlu0 %v1842, 95
        %v2231 = vpop.permute.xlu0 %2230
        %2232 = vrot.lane.b32.xlu0 %v1843, 95
        %v2233 = vpop.permute.xlu0 %2232
        %2234 = vrot.lane.b32.xlu0 %v1856, 95
        %v2235 = vpop.permute.xlu0 %2234
        %2236 = vrot.lane.b32.xlu0 %v1844, 95
        %v2237 = vpop.permute.xlu0 %2236
        %2238 = vrot.lane.b32.xlu0 %v1845, 95
        %v2239 = vpop.permute.xlu0 %2238
        %2240 = vrot.lane.b32.xlu0 %v1857, 95
        %v2241 = vpop.permute.xlu0 %2240
        %v2242 = vsel %vm1340, %v2219, %v2221
        %v2243 = vsel %vm1340, %v2221, %v2223
        %v2244 = vsel %vm1340, %v2225, %v2227
        %v2245 = vsel %vm1340, %v2227, %v2229
        %v2246 = vsel %vm1340, %v2231, %v2233
        %v2247 = vsel %vm1340, %v2233, %v2235
        %v2248 = vsel %vm1340, %v2237, %v2239
        %v2249 = vsel %vm1340, %v2239, %v2241
        %2270 = vrot.lane.b32.xlu0 %v1906, 94
        %v2271 = vpop.permute.xlu0 %2270
        %2272 = vrot.lane.b32.xlu0 %v1907, 94
        %v2273 = vpop.permute.xlu0 %2272
        %2274 = vrot.lane.b32.xlu0 %v1908, 94
        %v2275 = vpop.permute.xlu0 %2274
        %2276 = vrot.lane.b32.xlu0 %v1909, 94
        %v2277 = vpop.permute.xlu0 %2276
        %2278 = vrot.lane.b32.xlu0 %v1910, 94
        %v2279 = vpop.permute.xlu0 %2278
        %2280 = vrot.lane.b32.xlu0 %v1911, 94
        %v2281 = vpop.permute.xlu0 %2280
        %2282 = vrot.lane.b32.xlu0 %v1912, 94
        %v2283 = vpop.permute.xlu0 %2282
        %2284 = vrot.lane.b32.xlu0 %v1913, 94
        %v2285 = vpop.permute.xlu0 %2284
        %2286 = vrot.lane.b32.xlu0 %v1914, 94
        %v2287 = vpop.permute.xlu0 %2286
        %2288 = vrot.lane.b32.xlu0 %v1915, 94
        %v2289 = vpop.permute.xlu0 %2288
        %2290 = vrot.lane.b32.xlu0 %v1916, 94
        %v2291 = vpop.permute.xlu0 %2290
        %2292 = vrot.lane.b32.xlu0 %v1917, 94
        %v2293 = vpop.permute.xlu0 %2292
        %v2294 = vsel %vm1445, %v2271, %v2273
        %v2295 = vsel %vm1445, %v2273, %v2275
        %v2296 = vsel %vm1445, %v2277, %v2279
        %v2297 = vsel %vm1445, %v2279, %v2281
        %v2298 = vsel %vm1445, %v2283, %v2285
        %v2299 = vsel %vm1445, %v2285, %v2287
        %v2300 = vsel %vm1445, %v2289, %v2291
        %v2301 = vsel %vm1445, %v2291, %v2293
        %2311 = vset.pattern.permute.xlu0 0
        %2312 = vperm.xlu0 %2311, %v339
        %v2313 = vpop.permute.xlu0 %2312
        %v2316 = vcombine.high %v338, %v338
        %v2318 = vunpack.c.l.s4 1983009808
        %v2319 = vunpack.c.0.s8 %v2318
        %v2320 = vlaneseq
        %v2321 = vshrl.u32 %v2320, 7
        %v2322 = vsub.s32 %v2319, %v2321
        %v2323 = vrot.slane %v338, %v2322
        %v2325 = vunpack.c.l.s4 1983009808
        %v2326 = vunpack.c.0.s8 %v2325
        %v2327 = vlaneseq
        %v2328 = vshrl.u32 %v2327, 7
        %v2329 = vsub.s32 %v2326, %v2328
        %v2330 = vrot.slane %v2316, %v2329
        %v2331 = vcombine.high %v2323, %v2323
        %v2334 = vsel %vm624, %v2330, 0
        %2336 = vmatprep.subr.mxu0 %v1847
        %2337 = vmatpush1.msra.mxu0 %v1846
        %2338 = vmatprep.subr.mxu0 %v1849
        %2339 = vmatpush1.msra.mxu0 %v1848
        %2340 = vmatprep.subr.mxu0 %v1851
        %2341 = vmatpush1.msra.mxu0 %v1850
        %2342 = vmatprep.subr.mxu0 %v1853
        %2343 = vmatpush1.msra.mxu0 %v1852
        %2344 = vmatprep.subr.mxu0 %v1955
        %2345 = vmatpush1.msra.mxu0 %v1954
        %2346 = vmatprep.subr.mxu0 %v1957
        %2347 = vmatpush1.msra.mxu0 %v1956
        %2348 = vmatprep.subr.mxu0 %v1959
        %2349 = vmatpush1.msra.mxu0 %v1958
        %2350 = vmatprep.subr.mxu0 %v1961
        %2351 = vmatpush1.msra.mxu0 %v1960
        %2352 = vmatprep.subr.mxu0 %v2007
        %2353 = vmatpush1.msra.mxu0 %v2006
        %2354 = vmatprep.subr.mxu0 %v2009
        %2355 = vmatpush1.msra.mxu0 %v2008
        %2356 = vmatprep.subr.mxu0 %v2011
        %2357 = vmatpush1.msra.mxu0 %v2010
        %2358 = vmatprep.subr.mxu0 %v2013
        %2359 = vmatpush1.msra.mxu0 %v2012
        %2360 = vmatprep.subr.mxu0 %v2059
        %2361 = vmatpush1.msra.mxu0 %v2058
        %2362 = vmatprep.subr.mxu0 %v2061
        %2363 = vmatpush1.msra.mxu0 %v2060
        %2364 = vmatprep.subr.mxu0 %v2063
        %2365 = vmatpush1.msra.mxu0 %v2062
        %2366 = vmatprep.subr.mxu0 %v2065
        %2367 = vmatpush1.msra.mxu0 %v2064
        %2368 = vmatprep.subr.mxu0 %v2099
        %2369 = vmatpush1.msra.mxu0 %v2098
        %2370 = vmatprep.subr.mxu0 %v2101
        %2371 = vmatpush1.msra.mxu0 %v2100
        %2372 = vmatprep.subr.mxu0 %v2103
        %2373 = vmatpush1.msra.mxu0 %v2102
        %2374 = vmatprep.subr.mxu0 %v2105
        %2375 = vmatpush1.msra.mxu0 %v2104
        %2376 = vmatprep.subr.mxu0 %v2151
        %2377 = vmatpush1.msra.mxu0 %v2150
        %2378 = vmatprep.subr.mxu0 %v2153
        %2379 = vmatpush1.msra.mxu0 %v2152
        %2380 = vmatprep.subr.mxu0 %v2155
        %2381 = vmatpush1.msra.mxu0 %v2154
        %2382 = vmatprep.subr.mxu0 %v2157
        %2383 = vmatpush1.msra.mxu0 %v2156
        %2384 = vmatprep.subr.mxu0 %v2203
        %2385 = vmatpush1.msra.mxu0 %v2202
        %2386 = vmatprep.subr.mxu0 %v2205
        %2387 = vmatpush1.msra.mxu0 %v2204
        %2388 = vmatprep.subr.mxu0 %v2207
        %2389 = vmatpush1.msra.mxu0 %v2206
        %2390 = vmatprep.subr.mxu0 %v2209
        %2391 = vmatpush1.msra.mxu0 %v2208
        %2392 = vmatprep.subr.mxu0 %v2243
        %2393 = vmatpush1.msra.mxu0 %v2242
        %2394 = vmatprep.subr.mxu0 %v2245
        %2395 = vmatpush1.msra.mxu0 %v2244
        %2396 = vmatprep.subr.mxu0 %v2247
        %2397 = vmatpush1.msra.mxu0 %v2246
        %2398 = vmatprep.subr.mxu0 %v2249
        %2399 = vmatpush1.msra.mxu0 %v2248
        %2400 = vmatprep.mubr.f32.mxu0 %v2331
        %2401 = vmatmul.mubr.f32.gmra.mrb[0].mxu0 %v2323
        %v2402 = vpop.f32.mrb[0].mxu0
        %v2403 = vadd.f32 %v2313, %v2402
        %v2404 = vpop.f32.mrb[0].mxu0
        %v2405 = vadd.f32 %v2313, %v2404
        %2406 = vdwg.mxu0
        %2407 = vmatprep.subr.mxu0 %v2295
        %2408 = vmatpush1.msra.mxu0 %v2294
        %2409 = vmatprep.subr.mxu0 %v2297
        %2410 = vmatpush1.msra.mxu0 %v2296
        %2411 = vmatprep.subr.mxu0 %v2299
        %2412 = vmatpush1.msra.mxu0 %v2298
        %2413 = vmatprep.subr.mxu0 %v2301
        %2414 = vmatpush1.msra.mxu0 %v2300
        %2415 = vmatprep.subr.mxu0 0.0
        %2416 = vmatpush1.msra.mxu0 0.0
        %2417 = vmatprep.subr.mxu0 0.0
        %2418 = vmatpush1.msra.mxu0 0.0
        %2419 = vmatprep.subr.mxu0 0.0
        %2420 = vmatpush1.msra.mxu0 0.0
        %2421 = vmatprep.subr.mxu0 0.0
        %2422 = vmatpush1.msra.mxu0 0.0
        %2423 = vmatprep.subr.mxu0 0.0
        %2424 = vmatpush1.msra.mxu0 0.0
        %2425 = vmatprep.subr.mxu0 0.0
        %2426 = vmatpush1.msra.mxu0 0.0
        %2427 = vmatprep.subr.mxu0 0.0
        %2428 = vmatpush1.msra.mxu0 0.0
        %2429 = vmatprep.subr.mxu0 0.0
        %2430 = vmatpush1.msra.mxu0 0.0
        %2431 = vmatprep.subr.mxu0 0.0
        %2432 = vmatpush1.msra.mxu0 0.0
        %2433 = vmatprep.subr.mxu0 0.0
        %2434 = vmatpush1.msra.mxu0 0.0
        %2435 = vmatprep.subr.mxu0 0.0
        %2436 = vmatpush1.msra.mxu0 0.0
        %2437 = vmatprep.subr.mxu0 0.0
        %2438 = vmatpush1.msra.mxu0 0.0
        %2439 = vmatprep.subr.mxu0 0.0
        %2440 = vmatpush1.msra.mxu0 0.0
        %2441 = vmatprep.subr.mxu0 0.0
        %2442 = vmatpush1.msra.mxu0 0.0
        %2443 = vmatprep.subr.mxu0 0.0
        %2444 = vmatpush1.msra.mxu0 0.0
        %2445 = vmatprep.subr.mxu0 0.0
        %2446 = vmatpush1.msra.mxu0 0.0
        %2447 = vmatprep.subr.mxu0 0.0
        %2448 = vmatpush1.msra.mxu0 0.0
        %2449 = vmatprep.subr.mxu0 0.0
        %2450 = vmatpush1.msra.mxu0 0.0
        %2451 = vmatprep.subr.mxu0 0.0
        %2452 = vmatpush1.msra.mxu0 0.0
        %2453 = vmatprep.subr.mxu0 0.0
        %2454 = vmatpush1.msra.mxu0 0.0
        %2455 = vmatprep.subr.mxu0 0.0
        %2456 = vmatpush1.msra.mxu0 0.0
        %2457 = vmatprep.subr.mxu0 0.0
        %2458 = vmatpush1.msra.mxu0 0.0
        %2459 = vmatprep.subr.mxu0 0.0
        %2460 = vmatpush1.msra.mxu0 0.0
        %2461 = vmatprep.subr.mxu0 0.0
        %2462 = vmatpush1.msra.mxu0 0.0
        %2463 = vmatprep.subr.mxu0 0.0
        %2464 = vmatpush1.msra.mxu0 0.0
        %2465 = vmatprep.subr.mxu0 0.0
        %2466 = vmatpush1.msra.mxu0 0.0
        %2467 = vmatprep.subr.mxu0 0.0
        %2468 = vmatpush1.msra.mxu0 0.0
        %2469 = vmatprep.subr.mxu0 0.0
        %2470 = vmatpush1.msra.mxu0 0.0
        %2471 = vmatprep.mubr.f32.mxu0 0.0
        %2472 = vmatmul.mubr.f32.gmra.mrb[0].mxu0 %v2334
        %v2473 = vpop.f32.mrb[0].mxu0
        %v2474 = vadd.f32 %v2403, %v2473
        %v2475 = vpop.f32.mrb[0].mxu0
        %v2476 = vadd.f32 %v2405, %v2475
        %2477 = vdwg.mxu0
        %v2480 = vcombine.low %v2474, %v2476
        %v2482 = vunpack.c.l.s4 1983009808
        %v2483 = vunpack.c.0.s8 %v2482
        %v2484 = vlaneseq
        %v2485 = vshrl.u32 %v2484, 7
        %v2486 = vsub.s32 %v2483, %v2485
        %v2487 = vrot.slane %v2480, %v2486
        %2489 = vst [vmem:[%s284] sm:$0xf] %v2487
        %s2490 = sand.u32 %s163, 1
        %s2491 = scalar_lea.sflag [#allocation6], %s2490
        %s2492 = sand.u32 %s163, 1
        %s2493 = smul.addr %s2492, 4
        %s2494 = scalar_lea.vmem [#allocation9], %s2493
        // Predicated region
        $region53: #{tpu_custom_call.1} parent=43 // pred_check
          %p2495 = pneg %p173
        $region54: #{tpu_custom_call.1} parent=43 // pred_check_branch
          %2497 = sbr.rel (%p2495) target = $region56
        $region55: #{tpu_custom_call.1} parent=43 // pred_region
          %s2499 = ssub.s32 64, 64
          %2500 = vsyncadd %s2491, %s2499
          %s2501 = smul.addr %s24, 2
          %s2502 = smul.addr %s2501, 32
          %s2503 = scalar_lea.hbm %s6, %s2502
          %s2505 = sshll.u32 %s2494, 4
          %s2506 = int_to_ptr.vmem [resolvable:$true] %s2505
          %2508 = dma.vmem_to_hbm [thread:$0]  %s2506, 64, %s2503, %s2491
        $region56: #{tpu_custom_call.1} parent=43 // pred_fallthru
          _
      $region44: #{tpu_custom_call.1} parent=5 // pred_fallthru
        _
      %p2509 = scmp.le.s32.totalorder 2, %s19
      // Predicated region
      $region57: #{tpu_custom_call.1} parent=5 // pred_check
        %p2510 = pneg %p2509
      $region58: #{tpu_custom_call.1} parent=5 // pred_check_branch
        %2512 = sbr.rel (%p2510) target = $region60
      $region59: #{tpu_custom_call.1} parent=5 // pred_region
        %s2513 = ssub.s32 %s19, 2
        // Predicated region
        $region61: #{tpu_custom_call.1} parent=59 // pred_check
          %p2514 = pneg %p179
        $region62: #{tpu_custom_call.1} parent=59 // pred_check_branch
          %2516 = sbr.rel (%p2514) target = $region64
        $region63: #{tpu_custom_call.1} parent=59 // pred_region
          %s2517 = sand.u32 %s164, 1
          %s2518 = scalar_lea.sflag [#allocation6], %s2517
          %s2519 = sand.u32 %s164, 1
          %s2520 = smul.addr %s2519, 4
          %s2521 = scalar_lea.vmem [#allocation9], %s2520
          %2522 = dma.done %s2518, 64
        $region64: #{tpu_custom_call.1} parent=59 // pred_fallthru
          _
      $region60: #{tpu_custom_call.1} parent=5 // pred_fallthru
        _
    $region6: #{tpu_custom_call.1} parent=1 // loop_footer
      %s23 = sadd.s32 1, %s19
    $region7: #{tpu_custom_call.1} parent=1 // loop_footer_branch
      %18 = sbr.rel target = $region3
    $region8: #{tpu_custom_call.1} parent=1 // loop_exit
      _
    %2523 = vsyncpa [#allocation5], 1
    %s2524 = scalar_lea.sflag [#allocation5], 1
    %2525 = vsyncpa %s2524, 1
    %2526 = vsyncpa [#allocation8], 1
    %2527 = vsyncpa [#allocation6], 1
    %s2528 = scalar_lea.sflag [#allocation6], 1
    %2529 = vsyncpa %s2528, 1

</llo_original>
